<compile_context>
chip_gen: v7x
topology: tpu7x:2x2x1
jax: 0.10.0
libtpu: 0.0.40
codegen_flags: <defaults>
</compile_context>

<pallas_src>
import jax
import jax.numpy as jnp
from jax.experimental import pallas as pl
from jax.experimental.pallas import tpu as pltpu

BLOCK_DIMS = [(52, 64), (64, 128), (128, 256), (256, 512)]
NUM_CLASSES = 2
PAD_IN = 128      # input features padded 52 -> 128 (numerically exact, zero rows/cols)
OUT_PAD = 128     # logits padded 2 -> 128 for a lane-dense output store
ROW_PACK = 16     # pad batch rows to a multiple of 16 (bf16 sublane packing)

# Per-block working width, padded to at least one full 128-lane vreg so the
# [activation | identity] split always lands on a 128-lane boundary.
WIDTHS = [max(fout, 128) for _, fout in BLOCK_DIMS]     # [128, 128, 256, 512]


def _bias_layout():
    """Column layout of the single f32 bias slab (all offsets 128-aligned)."""
    offs, o = {}, 0
    for i, w in enumerate(WIDTHS):
        offs[f"bcat{i}"] = (o, o + 2 * w); o += 2 * w    # [b1 | bs] of block i
        offs[f"b2{i}"] = (o, o + w); o += w              # b2 of block i
    offs["bfc"] = (o, o + OUT_PAD); o += OUT_PAD
    return offs, o


BIAS_OFF, BIAS_TOTAL = _bias_layout()

# Resident bf16 weight slab layout (rows x 256 lanes), blocks 1-2 only:
#   rows [  0,128) : block-1 [W1 | Ws]   (fin 52->128, fout 64->128, both padded)
#   rows [128,256) : block-2 [W1 | Ws]   (fin 64->128 padded)
#   rows [256,384) : [block-1 W2 | block-2 W2]  (each padded/laid out as 128x128)


# ----------------------------- Pallas kernel --------------------------------

def _mynet_fused_kernel(x_ref, wsmall_ref, bias_ref,
                        wcat3_hbm, w23_hbm, wcat4_hbm, w24_hbm, wfc_hbm,
                        o_ref,
                        wcat3_buf, w23_buf, wcat4_buf, w24_buf, wfc_buf, sem):
    """Fully fused forward pass: 4 residual blocks + final linear.

    Per block (BN already folded, eval mode):
        y   = x @ [W1 | Ws] + [b1 | bs]      # one wide matmul, shared LHS
        a   = relu(y[:, :F])                 # linear1 + bn1 + relu path
        idn = y[:, F:]                       # shortcut path
        x'  = relu(a @ W2 + b2 + idn)        # linear2 + bn2 + residual + relu
    Weights are bf16; dot accumulation and bias/residual adds are f32.
    Block-3/4 + FC weights stream HBM->VMEM while blocks 1-3 compute.
    """
    # Kick off all streamed-weight DMAs up front; each has a dedicated landing
    # buffer, so no rotation is needed -- the wait right before each layer is
    # the only synchronization.
    copies = [
        pltpu.make_async_copy(wcat3_hbm, wcat3_buf, sem.at[0]),
        pltpu.make_async_copy(w23_hbm, w23_buf, sem.at[1]),
        pltpu.make_async_copy(wcat4_hbm, wcat4_buf, sem.at[2]),
        pltpu.make_async_copy(w24_hbm, w24_buf, sem.at[3]),
        pltpu.make_async_copy(wfc_hbm, wfc_buf, sem.at[4]),
    ]
    for c in copies:
        c.start()

    def bias_slice(name):
        s, e = BIAS_OFF[name]
        return bias_ref[:, s:e]

    def res_block(h, wcat, bcat, w2, b2, width):
        y = jnp.dot(h, wcat, preferred_element_type=jnp.float32) + bcat
        a = jnp.maximum(y[:, :width], 0.0).astype(jnp.bfloat16)   # lin1+bn1+relu
        idn = y[:, width:]                                        # shortcut
        out = jnp.dot(a, w2, preferred_element_type=jnp.float32) + b2
        return jnp.maximum(out + idn, 0.0).astype(jnp.bfloat16)   # residual+relu

    h = x_ref[...]                                   # (B_pad, 128) bf16

    # Blocks 1 & 2: weights resident in the auto-DMA'd VMEM slab (static,
    # 128-aligned slices of the slab are free views).
    h = res_block(h, wsmall_ref[0:128, :], bias_slice("bcat0"),
                  wsmall_ref[256:384, 0:128], bias_slice("b20"), WIDTHS[0])
    h = res_block(h, wsmall_ref[128:256, :], bias_slice("bcat1"),
                  wsmall_ref[256:384, 128:256], bias_slice("b21"), WIDTHS[1])

    # Block 3: wait only for its own weights; block-4/FC DMAs stay in flight.
    copies[0].wait(); copies[1].wait()
    h = res_block(h, wcat3_buf[...], bias_slice("bcat2"),
                  w23_buf[...], bias_slice("b22"), WIDTHS[2])

    # Block 4.
    copies[2].wait(); copies[3].wait()
    h = res_block(h, wcat4_buf[...], bias_slice("bcat3"),
                  w24_buf[...], bias_slice("b23"), WIDTHS[3])

    # Final classifier: logits in lane-dense cols [0, NUM_CLASSES) of (B, 128).
    copies[4].wait()
    o_ref[...] = (jnp.dot(h, wfc_buf[...], preferred_element_type=jnp.float32)
                  + bias_slice("bfc"))


# ------------------------------ Pallas wrapper -------------------------------

def _vmem_spec(shape):
    return pl.BlockSpec(shape, lambda i: (0,) * len(shape))


def _fused_forward(x_pad, p):
    b_pad = x_pad.shape[0]
    w2, w3, w4 = WIDTHS[1], WIDTHS[2], WIDTHS[3]   # 128, 256, 512

    in_specs = [
        _vmem_spec(x_pad.shape),              # x (bf16, padded)
        _vmem_spec(p["w_small"].shape),       # resident block-1/2 weight slab
        _vmem_spec(p["bias"].shape),          # f32 bias slab
        pl.BlockSpec(memory_space=pl.ANY),    # wcat3 (streamed)
        pl.BlockSpec(memory_space=pl.ANY),    # w2_3  (streamed)
        pl.BlockSpec(memory_space=pl.ANY),    # wcat4 (streamed)
        pl.BlockSpec(memory_space=pl.ANY),    # w2_4  (streamed)
        pl.BlockSpec(memory_space=pl.ANY),    # wfc   (streamed)
    ]
    scratch_shapes = [
        pltpu.VMEM((w2, 2 * w3), jnp.bfloat16),    # wcat3 buf (128, 512)
        pltpu.VMEM((w3, w3), jnp.bfloat16),        # w2_3  buf (256, 256)
        pltpu.VMEM((w3, 2 * w4), jnp.bfloat16),    # wcat4 buf (256, 1024)
        pltpu.VMEM((w4, w4), jnp.bfloat16),        # w2_4  buf (512, 512)
        pltpu.VMEM((w4, OUT_PAD), jnp.bfloat16),   # wfc   buf (512, 128)
        pltpu.SemaphoreType.DMA((5,)),
    ]
    return pl.pallas_call(
        _mynet_fused_kernel,
        out_shape=jax.ShapeDtypeStruct((b_pad, OUT_PAD), jnp.float32),
        grid=(1,),
        in_specs=in_specs,
        out_specs=pl.BlockSpec((b_pad, OUT_PAD), lambda i: (0, 0)),
        scratch_shapes=scratch_shapes,
        # TODO(synk): for batches >~128 rows on v7x, add a leading "parallel"
        # batch grid axis (row block a multiple of 16) so both TensorCores are
        # used; pointless at B=8.
    )(x_pad, p["w_small"], p["bias"],
      p["wcat3"], p["w2_3"], p["wcat4"], p["w2_4"], p["wfc"])


# --------------------------- parameter construction --------------------------

def _uniform(key, shape, bound):
    return jax.random.uniform(key, shape, jnp.float32, -bound, bound)


def make_linear_params(key, fin, fout):
    """PyTorch-style init; weight stored as (in, out)."""
    kw, kb = jax.random.split(key)
    bound = 1.0 / jnp.sqrt(jnp.float32(fin))
    w = _uniform(kw, (fin, fout), bound)
    b = _uniform(kb, (fout,), bound)
    return w, b


def make_bn_params(key, f):
    """Deterministic (non-trivial) eval-mode BN parameters."""
    kg, kb, km, kv = jax.random.split(key, 4)
    gamma = 1.0 + 0.1 * jax.random.normal(kg, (f,), jnp.float32)
    beta = 0.1 * jax.random.normal(kb, (f,), jnp.float32)
    mean = 0.1 * jax.random.normal(km, (f,), jnp.float32)
    var = 1.0 + 0.1 * jax.random.uniform(kv, (f,), jnp.float32)
    return gamma, beta, mean, var


def fold_bn(w, b, gamma, beta, mean, var, eps=1e-5):
    """Fold eval-mode BatchNorm1d into a preceding Linear.  w: (in, out)."""
    scale = gamma / jnp.sqrt(var + eps)
    w_f = w * scale[None, :]
    b_f = (b - mean) * scale + beta
    return w_f, b_f.reshape(1, -1)


def _pad2(w, rows, cols):
    return jnp.zeros((rows, cols), jnp.float32).at[:w.shape[0], :w.shape[1]].set(w)


def make_mynet_params(key):
    keys = jax.random.split(key, len(BLOCK_DIMS) + 1)
    folded = []
    for i, (fin, fout) in enumerate(BLOCK_DIMS):
        k1, k2, k3, k4, k5, k6 = jax.random.split(keys[i], 6)
        w1, b1 = make_linear_params(k1, fin, fout)
        bn1 = make_bn_params(k2, fout)
        w2, b2 = make_linear_params(k3, fout, fout)
        bn2 = make_bn_params(k4, fout)
        ws, bs = make_linear_params(k5, fin, fout)
        bns = make_bn_params(k6, fout)
        w1f, b1f = fold_bn(w1, b1, *bn1)
        w2f, b2f = fold_bn(w2, b2, *bn2)
        wsf, bsf = fold_bn(ws, bs, *bns)
        folded.append((w1f, b1f, w2f, b2f, wsf, bsf))

    wfc, bfc = make_linear_params(keys[-1], BLOCK_DIMS[-1][1], NUM_CLASSES)
    ref_fc = (wfc, bfc.reshape(1, -1))

    (w1f1, _, w2f1, _, wsf1, _) = folded[0]
    (w1f2, _, w2f2, _, wsf2, _) = folded[1]
    (w1f3, _, w2f3, _, wsf3, _) = folded[2]
    (w1f4, _, w2f4, _, wsf4, _) = folded[3]

    # Resident VMEM slab (blocks 1-2), lane width 256, all pads exact zeros.
    wcat1 = jnp.concatenate([_pad2(w1f1, PAD_IN, 128), _pad2(wsf1, PAD_IN, 128)], axis=1)
    wcat2 = jnp.concatenate([_pad2(w1f2, 128, 128), _pad2(wsf2, 128, 128)], axis=1)
    w2s = jnp.concatenate([_pad2(w2f1, 128, 128), _pad2(w2f2, 128, 128)], axis=1)
    w_small = jnp.concatenate([wcat1, wcat2, w2s], axis=0).astype(jnp.bfloat16)  # (384,256)

    # Streamed HBM weights (blocks 3-4 + FC), natural shapes, bf16.
    wcat3 = jnp.concatenate([w1f3, wsf3], axis=1).astype(jnp.bfloat16)   # (128, 512)
    w2_3 = w2f3.astype(jnp.bfloat16)                                     # (256, 256)
    wcat4 = jnp.concatenate([w1f4, wsf4], axis=1).astype(jnp.bfloat16)   # (256, 1024)
    w2_4 = w2f4.astype(jnp.bfloat16)                                     # (512, 512)
    wfc_p = _pad2(wfc, BLOCK_DIMS[-1][1], OUT_PAD).astype(jnp.bfloat16)  # (512, 128)

    # Single f32 bias slab.
    bias = jnp.zeros((1, BIAS_TOTAL), jnp.float32)
    for i, (fin, fout) in enumerate(BLOCK_DIMS):
        width = WIDTHS[i]
        (_, b1f, _, b2f, _, bsf) = folded[i]
        s, _e = BIAS_OFF[f"bcat{i}"]
        bias = bias.at[0, s:s + fout].set(b1f[0])
        bias = bias.at[0, s + width:s + width + fout].set(bsf[0])
        t, _e = BIAS_OFF[f"b2{i}"]
        bias = bias.at[0, t:t + fout].set(b2f[0])
    u, _e = BIAS_OFF["bfc"]
    bias = bias.at[0, u:u + NUM_CLASSES].set(bfc)

    packed = {"w_small": w_small, "bias": bias,
              "wcat3": wcat3, "w2_3": w2_3, "wcat4": wcat4, "w2_4": w2_4, "wfc": wfc_p}
    return {"packed": packed, "ref": (folded, ref_fc)}


# --------------------------------- forward -----------------------------------

@jax.jit
def mynet_forward(x, params):
    p = params["packed"]
    b, fin = x.shape
    b_pad = ((b + ROW_PACK - 1) // ROW_PACK) * ROW_PACK
    # Pad 52 -> 128 features / batch -> multiple of 16, and cast to bf16 before
    # the kernel (halves the input DMA, kernel receives MXU-ready operands).
    x_pad = jnp.zeros((b_pad, PAD_IN), jnp.bfloat16).at[:b, :fin].set(x.astype(jnp.bfloat16))
    out_pad = _fused_forward(x_pad, p)
    return out_pad[:b, :NUM_CLASSES]


def _bf16_matmul(a, w):
    return jnp.dot(a.astype(jnp.bfloat16), w.astype(jnp.bfloat16),
                   preferred_element_type=jnp.float32)


def mynet_forward_ref(x, params):
    """Pure-JAX reference with unpacked (un-concatenated, unpadded) folded
    weights, mirroring the kernel's bf16-operand / f32-accumulate dtype path."""
    ref_blocks, (wfc, bfc) = params["ref"]
    h = x
    for (w1, b1, w2, b2, ws, bs) in ref_blocks:
        a = jnp.maximum(_bf16_matmul(h, w1) + b1, 0.0)
        out = _bf16_matmul(a, w2) + b2
        idn = _bf16_matmul(h, ws) + bs
        h = jnp.maximum(out + idn, 0.0)
    return _bf16_matmul(h, wfc) + bfc


# ----------------------------------- main ------------------------------------

if __name__ == "__main__":
    key = jax.random.PRNGKey(0)
    kx, kp = jax.random.split(key)

    B = 8
    x = jax.random.normal(kx, (B, BLOCK_DIMS[0][0]), jnp.float32)

    params = make_mynet_params(kp)

    y = mynet_forward(x, params)
    y = jax.block_until_ready(y)

    y_ref = mynet_forward_ref(x, params)
    assert y.shape == (B, NUM_CLASSES)
    assert jnp.allclose(y, y_ref, atol=1e-2, rtol=1e-2), (
        "Pallas output mismatch vs reference: "
        f"max abs diff = {jnp.max(jnp.abs(y - y_ref))}"
    )

    print("KERNEL_OK")
</pallas_src>

<mosaic_0001>
module attributes {stable_mosaic.version = 11 : i64} {
  func.func @_mynet_fused_kernel(%arg0: i32, %arg1: memref<16x128xbf16, #tpu.memory_space<vmem>>, %arg2: memref<384x256xbf16, #tpu.memory_space<vmem>>, %arg3: memref<1x3200xf32, #tpu.memory_space<vmem>>, %arg4: memref<128x512xbf16, #tpu.memory_space<any>>, %arg5: memref<256x256xbf16, #tpu.memory_space<any>>, %arg6: memref<256x1024xbf16, #tpu.memory_space<any>>, %arg7: memref<512x512xbf16, #tpu.memory_space<any>>, %arg8: memref<512x128xbf16, #tpu.memory_space<any>>, %arg9: memref<16x128xf32, #tpu.memory_space<vmem>>, %arg10: memref<128x512xbf16, #tpu.memory_space<vmem>>, %arg11: memref<256x256xbf16, #tpu.memory_space<vmem>>, %arg12: memref<256x1024xbf16, #tpu.memory_space<vmem>>, %arg13: memref<512x512xbf16, #tpu.memory_space<vmem>>, %arg14: memref<512x128xbf16, #tpu.memory_space<vmem>>, %arg15: memref<5x!tpu.dma_semaphore, #tpu.memory_space<semaphore_mem>>) attributes {dimension_semantics = [#tpu.dimension_semantics<arbitrary>], iteration_bounds = array<i64: 1>, scalar_prefetch = 0 : i64, scratch_operands = 6 : i64, tpu.core_type = #tpu.core_type<tc>, window_params = [{pipeline_mode = #tpu.pipeline_mode<synchronous>, transform_indices = @transform_0, window_bounds = array<i64: 16, 128>}, {pipeline_mode = #tpu.pipeline_mode<synchronous>, transform_indices = @transform_1, window_bounds = array<i64: 384, 256>}, {pipeline_mode = #tpu.pipeline_mode<synchronous>, transform_indices = @transform_2, window_bounds = array<i64: 1, 3200>}, {}, {}, {}, {}, {}, {pipeline_mode = #tpu.pipeline_mode<synchronous>, transform_indices = @transform_8, window_bounds = array<i64: 16, 128>}]} {
    %c0_i32 = arith.constant 0 : i32
    %0 = tpu.memref_slice %arg15[%c0_i32] : memref<5x!tpu.dma_semaphore, #tpu.memory_space<semaphore_mem>> -> memref<1x!tpu.dma_semaphore, #tpu.memory_space<semaphore_mem>>
    %1 = tpu.memref_squeeze %0 : memref<1x!tpu.dma_semaphore, #tpu.memory_space<semaphore_mem>> -> memref<!tpu.dma_semaphore, #tpu.memory_space<semaphore_mem>>
    tpu.enqueue_dma source(%arg4 : memref<128x512xbf16, #tpu.memory_space<any>>) target(%arg10 : memref<128x512xbf16, #tpu.memory_space<vmem>>) target_semaphore(%1 : memref<!tpu.dma_semaphore, #tpu.memory_space<semaphore_mem>>)
    %c1_i32 = arith.constant 1 : i32
    %2 = tpu.memref_slice %arg15[%c1_i32] : memref<5x!tpu.dma_semaphore, #tpu.memory_space<semaphore_mem>> -> memref<1x!tpu.dma_semaphore, #tpu.memory_space<semaphore_mem>>
    %3 = tpu.memref_squeeze %2 : memref<1x!tpu.dma_semaphore, #tpu.memory_space<semaphore_mem>> -> memref<!tpu.dma_semaphore, #tpu.memory_space<semaphore_mem>>
    tpu.enqueue_dma source(%arg5 : memref<256x256xbf16, #tpu.memory_space<any>>) target(%arg11 : memref<256x256xbf16, #tpu.memory_space<vmem>>) target_semaphore(%3 : memref<!tpu.dma_semaphore, #tpu.memory_space<semaphore_mem>>)
    %c2_i32 = arith.constant 2 : i32
    %4 = tpu.memref_slice %arg15[%c2_i32] : memref<5x!tpu.dma_semaphore, #tpu.memory_space<semaphore_mem>> -> memref<1x!tpu.dma_semaphore, #tpu.memory_space<semaphore_mem>>
    %5 = tpu.memref_squeeze %4 : memref<1x!tpu.dma_semaphore, #tpu.memory_space<semaphore_mem>> -> memref<!tpu.dma_semaphore, #tpu.memory_space<semaphore_mem>>
    tpu.enqueue_dma source(%arg6 : memref<256x1024xbf16, #tpu.memory_space<any>>) target(%arg12 : memref<256x1024xbf16, #tpu.memory_space<vmem>>) target_semaphore(%5 : memref<!tpu.dma_semaphore, #tpu.memory_space<semaphore_mem>>)
    %c3_i32 = arith.constant 3 : i32
    %6 = tpu.memref_slice %arg15[%c3_i32] : memref<5x!tpu.dma_semaphore, #tpu.memory_space<semaphore_mem>> -> memref<1x!tpu.dma_semaphore, #tpu.memory_space<semaphore_mem>>
    %7 = tpu.memref_squeeze %6 : memref<1x!tpu.dma_semaphore, #tpu.memory_space<semaphore_mem>> -> memref<!tpu.dma_semaphore, #tpu.memory_space<semaphore_mem>>
    tpu.enqueue_dma source(%arg7 : memref<512x512xbf16, #tpu.memory_space<any>>) target(%arg13 : memref<512x512xbf16, #tpu.memory_space<vmem>>) target_semaphore(%7 : memref<!tpu.dma_semaphore, #tpu.memory_space<semaphore_mem>>)
    %c4_i32 = arith.constant 4 : i32
    %8 = tpu.memref_slice %arg15[%c4_i32] : memref<5x!tpu.dma_semaphore, #tpu.memory_space<semaphore_mem>> -> memref<1x!tpu.dma_semaphore, #tpu.memory_space<semaphore_mem>>
    %9 = tpu.memref_squeeze %8 : memref<1x!tpu.dma_semaphore, #tpu.memory_space<semaphore_mem>> -> memref<!tpu.dma_semaphore, #tpu.memory_space<semaphore_mem>>
    tpu.enqueue_dma source(%arg8 : memref<512x128xbf16, #tpu.memory_space<any>>) target(%arg14 : memref<512x128xbf16, #tpu.memory_space<vmem>>) target_semaphore(%9 : memref<!tpu.dma_semaphore, #tpu.memory_space<semaphore_mem>>)
    %c0 = arith.constant 0 : index
    %c0_0 = arith.constant 0 : index
    %10 = vector.load %arg1[%c0, %c0_0] : memref<16x128xbf16, #tpu.memory_space<vmem>>, vector<16x128xbf16>
    %c0_1 = arith.constant 0 : index
    %c0_2 = arith.constant 0 : index
    %11 = vector.load %arg2[%c0_1, %c0_2] : memref<384x256xbf16, #tpu.memory_space<vmem>>, vector<128x256xbf16>
    %c0_3 = arith.constant 0 : index
    %c0_4 = arith.constant 0 : index
    %12 = vector.load %arg3[%c0_3, %c0_4] : memref<1x3200xf32, #tpu.memory_space<vmem>>, vector<1x256xf32>
    %c256 = arith.constant 256 : index
    %c0_5 = arith.constant 0 : index
    %13 = vector.load %arg2[%c256, %c0_5] : memref<384x256xbf16, #tpu.memory_space<vmem>>, vector<128x128xbf16>
    %c0_6 = arith.constant 0 : index
    %c256_7 = arith.constant 256 : index
    %14 = vector.load %arg3[%c0_6, %c256_7] : memref<1x3200xf32, #tpu.memory_space<vmem>>, vector<1x128xf32>
    %cst = arith.constant dense<0.000000e+00> : vector<16x256xf32>
    %15 = tpu.matmul %10, %11, %cst {dimension_numbers = #tpu.dot_dimension_numbers<[1], [0], [0], [1], [0, 0, 1, 1], [], []>} : vector<16x128xbf16>, vector<128x256xbf16>, vector<16x256xf32> -> vector<16x256xf32>
    %16 = vector.broadcast %12 : vector<1x256xf32> to vector<16x256xf32>
    %17 = arith.addf %15, %16 : vector<16x256xf32>
    %18 = vector.extract_strided_slice %17 {offsets = [0, 0], sizes = [16, 128], strides = [1, 1]} : vector<16x256xf32> to vector<16x128xf32>
    %cst_8 = arith.constant 0.000000e+00 : f32
    %19 = vector.broadcast %cst_8 : f32 to vector<16x128xf32>
    %20 = arith.maximumf %18, %19 : vector<16x128xf32>
    %21 = arith.truncf %20 : vector<16x128xf32> to vector<16x128xbf16>
    %22 = vector.extract_strided_slice %17 {offsets = [0, 128], sizes = [16, 128], strides = [1, 1]} : vector<16x256xf32> to vector<16x128xf32>
    %cst_9 = arith.constant dense<0.000000e+00> : vector<16x128xf32>
    %23 = tpu.matmul %21, %13, %cst_9 {dimension_numbers = #tpu.dot_dimension_numbers<[1], [0], [0], [1], [0, 0, 1, 1], [], []>} : vector<16x128xbf16>, vector<128x128xbf16>, vector<16x128xf32> -> vector<16x128xf32>
    %24 = vector.broadcast %14 : vector<1x128xf32> to vector<16x128xf32>
    %25 = arith.addf %23, %24 : vector<16x128xf32>
    %26 = arith.addf %25, %22 : vector<16x128xf32>
    %cst_10 = arith.constant 0.000000e+00 : f32
    %27 = vector.broadcast %cst_10 : f32 to vector<16x128xf32>
    %28 = arith.maximumf %26, %27 : vector<16x128xf32>
    %29 = arith.truncf %28 : vector<16x128xf32> to vector<16x128xbf16>
    %c128 = arith.constant 128 : index
    %c0_11 = arith.constant 0 : index
    %30 = vector.load %arg2[%c128, %c0_11] : memref<384x256xbf16, #tpu.memory_space<vmem>>, vector<128x256xbf16>
    %c0_12 = arith.constant 0 : index
    %c384 = arith.constant 384 : index
    %31 = vector.load %arg3[%c0_12, %c384] : memref<1x3200xf32, #tpu.memory_space<vmem>>, vector<1x256xf32>
    %c256_13 = arith.constant 256 : index
    %c128_14 = arith.constant 128 : index
    %32 = vector.load %arg2[%c256_13, %c128_14] : memref<384x256xbf16, #tpu.memory_space<vmem>>, vector<128x128xbf16>
    %c0_15 = arith.constant 0 : index
    %c640 = arith.constant 640 : index
    %33 = vector.load %arg3[%c0_15, %c640] : memref<1x3200xf32, #tpu.memory_space<vmem>>, vector<1x128xf32>
    %cst_16 = arith.constant dense<0.000000e+00> : vector<16x256xf32>
    %34 = tpu.matmul %29, %30, %cst_16 {dimension_numbers = #tpu.dot_dimension_numbers<[1], [0], [0], [1], [0, 0, 1, 1], [], []>} : vector<16x128xbf16>, vector<128x256xbf16>, vector<16x256xf32> -> vector<16x256xf32>
    %35 = vector.broadcast %31 : vector<1x256xf32> to vector<16x256xf32>
    %36 = arith.addf %34, %35 : vector<16x256xf32>
    %37 = vector.extract_strided_slice %36 {offsets = [0, 0], sizes = [16, 128], strides = [1, 1]} : vector<16x256xf32> to vector<16x128xf32>
    %cst_17 = arith.constant 0.000000e+00 : f32
    %38 = vector.broadcast %cst_17 : f32 to vector<16x128xf32>
    %39 = arith.maximumf %37, %38 : vector<16x128xf32>
    %40 = arith.truncf %39 : vector<16x128xf32> to vector<16x128xbf16>
    %41 = vector.extract_strided_slice %36 {offsets = [0, 128], sizes = [16, 128], strides = [1, 1]} : vector<16x256xf32> to vector<16x128xf32>
    %cst_18 = arith.constant dense<0.000000e+00> : vector<16x128xf32>
    %42 = tpu.matmul %40, %32, %cst_18 {dimension_numbers = #tpu.dot_dimension_numbers<[1], [0], [0], [1], [0, 0, 1, 1], [], []>} : vector<16x128xbf16>, vector<128x128xbf16>, vector<16x128xf32> -> vector<16x128xf32>
    %43 = vector.broadcast %33 : vector<1x128xf32> to vector<16x128xf32>
    %44 = arith.addf %42, %43 : vector<16x128xf32>
    %45 = arith.addf %44, %41 : vector<16x128xf32>
    %cst_19 = arith.constant 0.000000e+00 : f32
    %46 = vector.broadcast %cst_19 : f32 to vector<16x128xf32>
    %47 = arith.maximumf %45, %46 : vector<16x128xf32>
    %48 = arith.truncf %47 : vector<16x128xf32> to vector<16x128xbf16>
    %c0_i32_20 = arith.constant 0 : i32
    %49 = tpu.memref_slice %arg15[%c0_i32_20] : memref<5x!tpu.dma_semaphore, #tpu.memory_space<semaphore_mem>> -> memref<1x!tpu.dma_semaphore, #tpu.memory_space<semaphore_mem>>
    %50 = tpu.memref_squeeze %49 : memref<1x!tpu.dma_semaphore, #tpu.memory_space<semaphore_mem>> -> memref<!tpu.dma_semaphore, #tpu.memory_space<semaphore_mem>>
    tpu.wait_dma2 semaphore(%50 : memref<!tpu.dma_semaphore, #tpu.memory_space<semaphore_mem>>) src(%arg4 : memref<128x512xbf16, #tpu.memory_space<any>>) dst(%arg10 : memref<128x512xbf16, #tpu.memory_space<vmem>>)
    %c1_i32_21 = arith.constant 1 : i32
    %51 = tpu.memref_slice %arg15[%c1_i32_21] : memref<5x!tpu.dma_semaphore, #tpu.memory_space<semaphore_mem>> -> memref<1x!tpu.dma_semaphore, #tpu.memory_space<semaphore_mem>>
    %52 = tpu.memref_squeeze %51 : memref<1x!tpu.dma_semaphore, #tpu.memory_space<semaphore_mem>> -> memref<!tpu.dma_semaphore, #tpu.memory_space<semaphore_mem>>
    tpu.wait_dma2 semaphore(%52 : memref<!tpu.dma_semaphore, #tpu.memory_space<semaphore_mem>>) src(%arg5 : memref<256x256xbf16, #tpu.memory_space<any>>) dst(%arg11 : memref<256x256xbf16, #tpu.memory_space<vmem>>)
    %c0_22 = arith.constant 0 : index
    %c0_23 = arith.constant 0 : index
    %53 = vector.load %arg10[%c0_22, %c0_23] : memref<128x512xbf16, #tpu.memory_space<vmem>>, vector<128x512xbf16>
    %c0_24 = arith.constant 0 : index
    %c768 = arith.constant 768 : index
    %54 = vector.load %arg3[%c0_24, %c768] : memref<1x3200xf32, #tpu.memory_space<vmem>>, vector<1x512xf32>
    %c0_25 = arith.constant 0 : index
    %c0_26 = arith.constant 0 : index
    %55 = vector.load %arg11[%c0_25, %c0_26] : memref<256x256xbf16, #tpu.memory_space<vmem>>, vector<256x256xbf16>
    %c0_27 = arith.constant 0 : index
    %c1280 = arith.constant 1280 : index
    %56 = vector.load %arg3[%c0_27, %c1280] : memref<1x3200xf32, #tpu.memory_space<vmem>>, vector<1x256xf32>
    %cst_28 = arith.constant dense<0.000000e+00> : vector<16x512xf32>
    %57 = tpu.matmul %48, %53, %cst_28 {dimension_numbers = #tpu.dot_dimension_numbers<[1], [0], [0], [1], [0, 0, 1, 1], [], []>} : vector<16x128xbf16>, vector<128x512xbf16>, vector<16x512xf32> -> vector<16x512xf32>
    %58 = vector.broadcast %54 : vector<1x512xf32> to vector<16x512xf32>
    %59 = arith.addf %57, %58 : vector<16x512xf32>
    %60 = vector.extract_strided_slice %59 {offsets = [0, 0], sizes = [16, 256], strides = [1, 1]} : vector<16x512xf32> to vector<16x256xf32>
    %cst_29 = arith.constant 0.000000e+00 : f32
    %61 = vector.broadcast %cst_29 : f32 to vector<16x256xf32>
    %62 = arith.maximumf %60, %61 : vector<16x256xf32>
    %63 = arith.truncf %62 : vector<16x256xf32> to vector<16x256xbf16>
    %64 = vector.extract_strided_slice %59 {offsets = [0, 256], sizes = [16, 256], strides = [1, 1]} : vector<16x512xf32> to vector<16x256xf32>
    %cst_30 = arith.constant dense<0.000000e+00> : vector<16x256xf32>
    %65 = tpu.matmul %63, %55, %cst_30 {dimension_numbers = #tpu.dot_dimension_numbers<[1], [0], [0], [1], [0, 0, 1, 1], [], []>} : vector<16x256xbf16>, vector<256x256xbf16>, vector<16x256xf32> -> vector<16x256xf32>
    %66 = vector.broadcast %56 : vector<1x256xf32> to vector<16x256xf32>
    %67 = arith.addf %65, %66 : vector<16x256xf32>
    %68 = arith.addf %67, %64 : vector<16x256xf32>
    %cst_31 = arith.constant 0.000000e+00 : f32
    %69 = vector.broadcast %cst_31 : f32 to vector<16x256xf32>
    %70 = arith.maximumf %68, %69 : vector<16x256xf32>
    %71 = arith.truncf %70 : vector<16x256xf32> to vector<16x256xbf16>
    %c2_i32_32 = arith.constant 2 : i32
    %72 = tpu.memref_slice %arg15[%c2_i32_32] : memref<5x!tpu.dma_semaphore, #tpu.memory_space<semaphore_mem>> -> memref<1x!tpu.dma_semaphore, #tpu.memory_space<semaphore_mem>>
    %73 = tpu.memref_squeeze %72 : memref<1x!tpu.dma_semaphore, #tpu.memory_space<semaphore_mem>> -> memref<!tpu.dma_semaphore, #tpu.memory_space<semaphore_mem>>
    tpu.wait_dma2 semaphore(%73 : memref<!tpu.dma_semaphore, #tpu.memory_space<semaphore_mem>>) src(%arg6 : memref<256x1024xbf16, #tpu.memory_space<any>>) dst(%arg12 : memref<256x1024xbf16, #tpu.memory_space<vmem>>)
    %c3_i32_33 = arith.constant 3 : i32
    %74 = tpu.memref_slice %arg15[%c3_i32_33] : memref<5x!tpu.dma_semaphore, #tpu.memory_space<semaphore_mem>> -> memref<1x!tpu.dma_semaphore, #tpu.memory_space<semaphore_mem>>
    %75 = tpu.memref_squeeze %74 : memref<1x!tpu.dma_semaphore, #tpu.memory_space<semaphore_mem>> -> memref<!tpu.dma_semaphore, #tpu.memory_space<semaphore_mem>>
    tpu.wait_dma2 semaphore(%75 : memref<!tpu.dma_semaphore, #tpu.memory_space<semaphore_mem>>) src(%arg7 : memref<512x512xbf16, #tpu.memory_space<any>>) dst(%arg13 : memref<512x512xbf16, #tpu.memory_space<vmem>>)
    %c0_34 = arith.constant 0 : index
    %c0_35 = arith.constant 0 : index
    %76 = vector.load %arg12[%c0_34, %c0_35] : memref<256x1024xbf16, #tpu.memory_space<vmem>>, vector<256x1024xbf16>
    %c0_36 = arith.constant 0 : index
    %c1536 = arith.constant 1536 : index
    %77 = vector.load %arg3[%c0_36, %c1536] : memref<1x3200xf32, #tpu.memory_space<vmem>>, vector<1x1024xf32>
    %c0_37 = arith.constant 0 : index
    %c0_38 = arith.constant 0 : index
    %78 = vector.load %arg13[%c0_37, %c0_38] : memref<512x512xbf16, #tpu.memory_space<vmem>>, vector<512x512xbf16>
    %c0_39 = arith.constant 0 : index
    %c2560 = arith.constant 2560 : index
    %79 = vector.load %arg3[%c0_39, %c2560] : memref<1x3200xf32, #tpu.memory_space<vmem>>, vector<1x512xf32>
    %cst_40 = arith.constant dense<0.000000e+00> : vector<16x1024xf32>
    %80 = tpu.matmul %71, %76, %cst_40 {dimension_numbers = #tpu.dot_dimension_numbers<[1], [0], [0], [1], [0, 0, 1, 1], [], []>} : vector<16x256xbf16>, vector<256x1024xbf16>, vector<16x1024xf32> -> vector<16x1024xf32>
    %81 = vector.broadcast %77 : vector<1x1024xf32> to vector<16x1024xf32>
    %82 = arith.addf %80, %81 : vector<16x1024xf32>
    %83 = vector.extract_strided_slice %82 {offsets = [0, 0], sizes = [16, 512], strides = [1, 1]} : vector<16x1024xf32> to vector<16x512xf32>
    %cst_41 = arith.constant 0.000000e+00 : f32
    %84 = vector.broadcast %cst_41 : f32 to vector<16x512xf32>
    %85 = arith.maximumf %83, %84 : vector<16x512xf32>
    %86 = arith.truncf %85 : vector<16x512xf32> to vector<16x512xbf16>
    %87 = vector.extract_strided_slice %82 {offsets = [0, 512], sizes = [16, 512], strides = [1, 1]} : vector<16x1024xf32> to vector<16x512xf32>
    %cst_42 = arith.constant dense<0.000000e+00> : vector<16x512xf32>
    %88 = tpu.matmul %86, %78, %cst_42 {dimension_numbers = #tpu.dot_dimension_numbers<[1], [0], [0], [1], [0, 0, 1, 1], [], []>} : vector<16x512xbf16>, vector<512x512xbf16>, vector<16x512xf32> -> vector<16x512xf32>
    %89 = vector.broadcast %79 : vector<1x512xf32> to vector<16x512xf32>
    %90 = arith.addf %88, %89 : vector<16x512xf32>
    %91 = arith.addf %90, %87 : vector<16x512xf32>
    %cst_43 = arith.constant 0.000000e+00 : f32
    %92 = vector.broadcast %cst_43 : f32 to vector<16x512xf32>
    %93 = arith.maximumf %91, %92 : vector<16x512xf32>
    %94 = arith.truncf %93 : vector<16x512xf32> to vector<16x512xbf16>
    %c4_i32_44 = arith.constant 4 : i32
    %95 = tpu.memref_slice %arg15[%c4_i32_44] : memref<5x!tpu.dma_semaphore, #tpu.memory_space<semaphore_mem>> -> memref<1x!tpu.dma_semaphore, #tpu.memory_space<semaphore_mem>>
    %96 = tpu.memref_squeeze %95 : memref<1x!tpu.dma_semaphore, #tpu.memory_space<semaphore_mem>> -> memref<!tpu.dma_semaphore, #tpu.memory_space<semaphore_mem>>
    tpu.wait_dma2 semaphore(%96 : memref<!tpu.dma_semaphore, #tpu.memory_space<semaphore_mem>>) src(%arg8 : memref<512x128xbf16, #tpu.memory_space<any>>) dst(%arg14 : memref<512x128xbf16, #tpu.memory_space<vmem>>)
    %c0_45 = arith.constant 0 : index
    %c0_46 = arith.constant 0 : index
    %97 = vector.load %arg14[%c0_45, %c0_46] : memref<512x128xbf16, #tpu.memory_space<vmem>>, vector<512x128xbf16>
    %cst_47 = arith.constant dense<0.000000e+00> : vector<16x128xf32>
    %98 = tpu.matmul %94, %97, %cst_47 {dimension_numbers = #tpu.dot_dimension_numbers<[1], [0], [0], [1], [0, 0, 1, 1], [], []>} : vector<16x512xbf16>, vector<512x128xbf16>, vector<16x128xf32> -> vector<16x128xf32>
    %c0_48 = arith.constant 0 : index
    %c3072 = arith.constant 3072 : index
    %99 = vector.load %arg3[%c0_48, %c3072] : memref<1x3200xf32, #tpu.memory_space<vmem>>, vector<1x128xf32>
    %100 = vector.broadcast %99 : vector<1x128xf32> to vector<16x128xf32>
    %101 = arith.addf %98, %100 : vector<16x128xf32>
    %c0_49 = arith.constant 0 : index
    %c0_50 = arith.constant 0 : index
    %102 = vector.load %arg9[%c0_49, %c0_50] : memref<16x128xf32, #tpu.memory_space<vmem>>, vector<16x128xf32>
    tpu.vector_store %arg9[%c0_49, %c0_50], %101 {strides = array<i32>} : memref<16x128xf32, #tpu.memory_space<vmem>>, vector<16x128xf32>,
    return
  }
  func.func @transform_0(%arg0: i32) -> (i32, i32) {
    %c0_i32 = arith.constant 0 : i32
    %c0_i32_0 = arith.constant 0 : i32
    %c0_i32_1 = arith.constant 0 : i32
    return %c0_i32, %c0_i32_0 : i32, i32
  }
  func.func @transform_1(%arg0: i32) -> (i32, i32) {
    %c0_i32 = arith.constant 0 : i32
    %c0_i32_0 = arith.constant 0 : i32
    %c0_i32_1 = arith.constant 0 : i32
    return %c0_i32, %c0_i32_0 : i32, i32
  }
  func.func @transform_2(%arg0: i32) -> (i32, i32) {
    %c0_i32 = arith.constant 0 : i32
    %c0_i32_0 = arith.constant 0 : i32
    %c0_i32_1 = arith.constant 0 : i32
    return %c0_i32, %c0_i32_0 : i32, i32
  }
  func.func @transform_8(%arg0: i32) -> (i32, i32) {
    %c0_i32 = arith.constant 0 : i32
    %c0_i32_0 = arith.constant 0 : i32
    %c0_i32_1 = arith.constant 0 : i32
    return %c0_i32, %c0_i32_0 : i32, i32
  }
}

</mosaic_0001>

<llo_original>
// kernel: mynet_forward.1
$region0: #{mynet_forward.1}
  #allocation0 [shape = 'u32[]', space=smem, size = 0x4, offset = 0x4, fixed_abs, tag = 'smem constant byte address 0x4 - core index']
  #allocation1 [shape = 'u32[144,128]{1,0:T(1,128)}', space=vmem, size = 0x12000, scoped, tag = 'internal scratch']
  #allocation2 [shape = 'bf16[128,512]{1,0:T(16,128)(2,1)}', space=vmem, size = 0x20000, scoped, tag = 'scratch operand']
  #allocation3 [shape = 'bf16[256,256]{1,0:T(16,128)(2,1)}', space=vmem, size = 0x20000, scoped, tag = 'scratch operand']
  #allocation4 [shape = 'bf16[256,1024]{1,0:T(16,128)(2,1)}', space=vmem, size = 0x80000, scoped, tag = 'scratch operand']
  #allocation5 [shape = 'bf16[512,512]{1,0:T(16,128)(2,1)}', space=vmem, size = 0x80000, scoped, tag = 'scratch operand']
  #allocation6 [shape = 'bf16[512,128]{1,0:T(16,128)(2,1)}', space=vmem, size = 0x20000, scoped, tag = 'scratch operand']
  #allocation7 [shape = 's32[5]{0}', space=sflag, size = 0x14, scoped, tag = 'scratch operand']
  #allocation10 [shape = 's32[]', space=sflag, size = 0x4, offset = 0, fixed_abs, tag = 'sflag constant byte address 0x0 - dummy sync flag']
  #allocation12 [shape = 's32[]', space=sflag, size = 0x4, offset = 0, fixed_abs, tag = 'sflag constant byte address 0x0 - dummy sync flag']
  #allocation14 [shape = 's32[]', space=sflag, size = 0x4, offset = 0, fixed_abs, tag = 'sflag constant byte address 0x0 - dummy sync flag']
  #allocation16 [shape = 's32[]', space=sflag, size = 0x4, offset = 0, fixed_abs, tag = 'sflag constant byte address 0x0 - dummy sync flag']
  #allocation18 [shape = 's32[]', space=sflag, size = 0x4, offset = 0, fixed_abs, tag = 'sflag constant byte address 0x0 - dummy sync flag']
  #allocation19 [shape = 's32[]', space=sflag, size = 0x4, offset = 0, fixed_abs, tag = 'sflag constant byte address 0x0 - dummy sync flag']
  #allocation20 [shape = 'u32[]', space=smem, size = 0x4, offset = 0x44, fixed_abs, tag = 'smem constant byte address 0x44 - assertion arg 0']
  #allocation21 [shape = 'u32[]', space=smem, size = 0x4, offset = 0x48, fixed_abs, tag = 'smem constant byte address 0x48 - assertion arg 1']
  %s0 = inlined_call_operand.vmem [shape: bf16[16,128], index: 0, kind: input, shape index: {}]
  %s1 = inlined_call_operand.hbm [shape: bf16[384,256], index: 1, kind: input, shape index: {}]
  %s2 = inlined_call_operand.vmem [shape: f32[1,3200], index: 2, kind: input, shape index: {}]
  %s3 = inlined_call_operand.hbm [shape: bf16[128,512], index: 3, kind: input, shape index: {}]
  %s4 = inlined_call_operand.hbm [shape: bf16[256,256], index: 4, kind: input, shape index: {}]
  %s5 = inlined_call_operand.hbm [shape: bf16[256,1024], index: 5, kind: input, shape index: {}]
  %s6 = inlined_call_operand.hbm [shape: bf16[512,512], index: 6, kind: input, shape index: {}]
  %s7 = inlined_call_operand.hbm [shape: bf16[512,128], index: 7, kind: input, shape index: {}]
  %s8 = inlined_call_operand.vmem [shape: f32[16,128], index: 8, kind: output, shape index: {}]
  %s9 = sld [smem:[#allocation0]]
  $region30: #{mynet_forward.1} parent=0
    _
  %s11 = ssub.s32 1, %s9
  %s12 = scalar_select 0, %s11, %s9
  $region1: #{mynet_forward.1} parent=0
    #allocation8 [shape = 'u8[196608]{0}', space=vmem, size = 0x30000, scoped, tag = 'input window, operand 1, single buffered']
    #allocation9 [shape = 's32[1]{0}', space=sflag, size = 0x4, scoped, tag = 'scoped memory for mynet_forward.1']
    #allocation11 [shape = 'u32[9]{0}', space=smem, size = 0x24, scoped, tag = 'DMA stride descriptor']
    #allocation13 [shape = 'u32[9]{0}', space=smem, size = 0x24, scoped, tag = 'DMA stride descriptor']
    #allocation15 [shape = 'u32[9]{0}', space=smem, size = 0x24, scoped, tag = 'DMA stride descriptor']
    #allocation17 [shape = 'u32[9]{0}', space=smem, size = 0x24, scoped, tag = 'DMA stride descriptor']
    %13 = vsyncpa [#allocation9], 0
    // Predicated region
    $region2: #{mynet_forward.1} parent=1 // pred_check
      _
    $region3: #{mynet_forward.1} parent=1 // pred_check_branch
      %15 = sbr.rel (0) target = $region5
    $region4: #{mynet_forward.1} parent=1 // pred_region
      _
    $region5: #{mynet_forward.1} parent=1 // pred_fallthru
      _
    // Predicated region
    $region6: #{mynet_forward.1} parent=1 // pred_check
      _
    $region7: #{mynet_forward.1} parent=1 // pred_check_branch
      %17 = sbr.rel (0) target = $region9
    $region8: #{mynet_forward.1} parent=1 // pred_region
      %s19 = ssub.s32 6144, 6144
      %20 = vsyncadd [#allocation9], %s19
      %s21 = sshll.u32 [#allocation8], 4
      %s22 = int_to_ptr.vmem [resolvable:$true] %s21
      %27 = dma.hbm_to_vmem [thread:$0]  %s1, 6144, %s22, [#allocation9], 128, 128, 8
    $region9: #{mynet_forward.1} parent=1 // pred_fallthru
      _
    // Predicated region
    $region10: #{mynet_forward.1} parent=1 // pred_check
      _
    $region11: #{mynet_forward.1} parent=1 // pred_check_branch
      %29 = sbr.rel (0) target = $region13
    $region12: #{mynet_forward.1} parent=1 // pred_region
      _
    $region13: #{mynet_forward.1} parent=1 // pred_fallthru
      _
    // Predicated region
    $region14: #{mynet_forward.1} parent=1 // pred_check
      _
    $region15: #{mynet_forward.1} parent=1 // pred_check_branch
      %31 = sbr.rel (0) target = $region17
    $region16: #{mynet_forward.1} parent=1 // pred_region
      %32 = dma.done [#allocation9], 6144
    $region17: #{mynet_forward.1} parent=1 // pred_fallthru
      _
    %s35 = sshll.u32 1, 14
    %s36 = sxor.u32 4294967295, %s35
    %s38 = sld [smem:[#allocation0]]
    %s39 = sadd.s32 2, %s38
    %s41 = sshll.u32 7, 26
    %s42 = sxor.u32 4294967295, %s41
    %s43 = sand.u32 0, %s42
    %s44 = sshll.u32 %s39, 26
    %s45 = sor.u32 %s43, %s44
    %s46 = sshll.u32 [#allocation2], 4
    %s47 = int_to_ptr.vmem [resolvable:$true] %s46
    %50 = sst [smem:[#allocation11]] 512
    %s51 = scalar_lea.smem [#allocation11], 1
    %52 = sst [smem:[%s51]] 512
    %s53 = scalar_lea.smem [#allocation11], 2
    %54 = sst [smem:[%s53]] 4
    %s55 = scalar_lea.smem [#allocation11], 3
    %56 = sst [smem:[%s55]] 64
    %s57 = scalar_lea.smem [#allocation11], 4
    %58 = sst [smem:[%s57]] 128
    %s59 = scalar_lea.smem [#allocation11], 5
    %60 = sst [smem:[%s59]] 2
    %s61 = scalar_lea.smem [#allocation11], 6
    %62 = sst [smem:[%s61]] 256
    %s63 = scalar_lea.smem [#allocation11], 7
    %64 = sst [smem:[%s63]] 64
    %s65 = scalar_lea.smem [#allocation11], 8
    %66 = sst [smem:[%s65]] 4
    %68 = dma.general %s3, 4096, %s47, [#allocation7], [#allocation10], [#allocation11], %s45, 0
    %s69 = scalar_lea.sflag [#allocation7], 1
    %s71 = sshll.u32 1, 14
    %s72 = sxor.u32 4294967295, %s71
    %s74 = sadd.s32 2, %s38
    %s76 = sshll.u32 7, 26
    %s77 = sxor.u32 4294967295, %s76
    %s78 = sand.u32 0, %s77
    %s79 = sshll.u32 %s74, 26
    %s80 = sor.u32 %s78, %s79
    %s81 = sshll.u32 [#allocation3], 4
    %s82 = int_to_ptr.vmem [resolvable:$true] %s81
    %85 = sst [smem:[#allocation13]] 256
    %s86 = scalar_lea.smem [#allocation13], 1
    %87 = sst [smem:[%s86]] 256
    %s88 = scalar_lea.smem [#allocation13], 2
    %89 = sst [smem:[%s88]] 2
    %s90 = scalar_lea.smem [#allocation13], 3
    %91 = sst [smem:[%s90]] 64
    %s92 = scalar_lea.smem [#allocation13], 4
    %93 = sst [smem:[%s92]] 128
    %s94 = scalar_lea.smem [#allocation13], 5
    %95 = sst [smem:[%s94]] 2
    %s96 = scalar_lea.smem [#allocation13], 6
    %97 = sst [smem:[%s96]] 128
    %s98 = scalar_lea.smem [#allocation13], 7
    %99 = sst [smem:[%s98]] 64
    %s100 = scalar_lea.smem [#allocation13], 8
    %101 = sst [smem:[%s100]] 4
    %103 = dma.general %s4, 4096, %s82, %s69, [#allocation12], [#allocation13], %s80, 0
    %s104 = scalar_lea.sflag [#allocation7], 2
    %s106 = sshll.u32 1, 14
    %s107 = sxor.u32 4294967295, %s106
    %s109 = sadd.s32 2, %s38
    %s111 = sshll.u32 7, 26
    %s112 = sxor.u32 4294967295, %s111
    %s113 = sand.u32 0, %s112
    %s114 = sshll.u32 %s109, 26
    %s115 = sor.u32 %s113, %s114
    %s116 = sshll.u32 [#allocation4], 4
    %s117 = int_to_ptr.vmem [resolvable:$true] %s116
    %120 = sst [smem:[#allocation15]] 1024
    %s121 = scalar_lea.smem [#allocation15], 1
    %122 = sst [smem:[%s121]] 1024
    %s123 = scalar_lea.smem [#allocation15], 2
    %124 = sst [smem:[%s123]] 8
    %s125 = scalar_lea.smem [#allocation15], 3
    %126 = sst [smem:[%s125]] 64
    %s127 = scalar_lea.smem [#allocation15], 4
    %128 = sst [smem:[%s127]] 128
    %s129 = scalar_lea.smem [#allocation15], 5
    %130 = sst [smem:[%s129]] 2
    %s131 = scalar_lea.smem [#allocation15], 6
    %132 = sst [smem:[%s131]] 512
    %s133 = scalar_lea.smem [#allocation15], 7
    %134 = sst [smem:[%s133]] 64
    %s135 = scalar_lea.smem [#allocation15], 8
    %136 = sst [smem:[%s135]] 4
    %138 = dma.general %s5, 16384, %s117, %s104, [#allocation14], [#allocation15], %s115, 0
    %s139 = scalar_lea.sflag [#allocation7], 3
    %s141 = sshll.u32 1, 14
    %s142 = sxor.u32 4294967295, %s141
    %s144 = sadd.s32 2, %s38
    %s146 = sshll.u32 7, 26
    %s147 = sxor.u32 4294967295, %s146
    %s148 = sand.u32 0, %s147
    %s149 = sshll.u32 %s144, 26
    %s150 = sor.u32 %s148, %s149
    %s151 = sshll.u32 [#allocation5], 4
    %s152 = int_to_ptr.vmem [resolvable:$true] %s151
    %155 = sst [smem:[#allocation17]] 512
    %s156 = scalar_lea.smem [#allocation17], 1
    %157 = sst [smem:[%s156]] 512
    %s158 = scalar_lea.smem [#allocation17], 2
    %159 = sst [smem:[%s158]] 4
    %s160 = scalar_lea.smem [#allocation17], 3
    %161 = sst [smem:[%s160]] 64
    %s162 = scalar_lea.smem [#allocation17], 4
    %163 = sst [smem:[%s162]] 128
    %s164 = scalar_lea.smem [#allocation17], 5
    %165 = sst [smem:[%s164]] 2
    %s166 = scalar_lea.smem [#allocation17], 6
    %167 = sst [smem:[%s166]] 256
    %s168 = scalar_lea.smem [#allocation17], 7
    %169 = sst [smem:[%s168]] 64
    %s170 = scalar_lea.smem [#allocation17], 8
    %171 = sst [smem:[%s170]] 4
    %173 = dma.general %s6, 16384, %s152, %s139, [#allocation16], [#allocation17], %s150, 0
    %s174 = scalar_lea.sflag [#allocation7], 4
    // Predicated region
    $region18: #{mynet_forward.1} parent=1 // pred_check
      _
    $region19: #{mynet_forward.1} parent=1 // pred_check_branch
      %176 = sbr.rel target = $region21
    $region20: #{mynet_forward.1} parent=1 // pred_region
      %177 = sst [smem:[#allocation20]] [#allocation19]
      %178 = sst [smem:[#allocation21]] [#allocation18]
    $region21: #{mynet_forward.1} parent=1 // pred_fallthru
      _
    %180 = shalt.err (0)
    %s182 = sshll.u32 [#allocation6], 4
    %s183 = int_to_ptr.vmem [resolvable:$true] %s182
    %185 = dma.hbm_to_vmem [thread:$0]  %s7, 4096, %s183, %s174
    %v186 = vld [vmem:[%s0] sm:$0xf]
    %v187 = vld [vmem:[%s0 + $0x4] sm:$0xf]
    %v188 = vld [vmem:[#allocation8] sm:$0xff]
    %v189 = vld [vmem:[#allocation8 + $0x8] sm:$0xff]
    %v190 = vld [vmem:[#allocation8 + $0x10] sm:$0xff]
    %v191 = vld [vmem:[#allocation8 + $0x18] sm:$0xff]
    %v192 = vld [vmem:[#allocation8 + $0x20] sm:$0xff]
    %v193 = vld [vmem:[#allocation8 + $0x28] sm:$0xff]
    %v194 = vld [vmem:[#allocation8 + $0x30] sm:$0xff]
    %v195 = vld [vmem:[#allocation8 + $0x38] sm:$0xff]
    %v196 = vld [vmem:[#allocation8 + $0x40] sm:$0xff]
    %v197 = vld [vmem:[#allocation8 + $0x48] sm:$0xff]
    %v198 = vld [vmem:[#allocation8 + $0x50] sm:$0xff]
    %v199 = vld [vmem:[#allocation8 + $0x58] sm:$0xff]
    %v200 = vld [vmem:[#allocation8 + $0x60] sm:$0xff]
    %v201 = vld [vmem:[#allocation8 + $0x68] sm:$0xff]
    %v202 = vld [vmem:[#allocation8 + $0x70] sm:$0xff]
    %v203 = vld [vmem:[#allocation8 + $0x78] sm:$0xff]
    %v204 = vld [vmem:[%s2] sm:$0x3]
    %v205 = vld [vmem:[#allocation8 + $0x100] sm:$0xf]
    %v206 = vld [vmem:[#allocation8 + $0x108] sm:$0xf]
    %v207 = vld [vmem:[#allocation8 + $0x110] sm:$0xf]
    %v208 = vld [vmem:[#allocation8 + $0x118] sm:$0xf]
    %v209 = vld [vmem:[#allocation8 + $0x120] sm:$0xf]
    %v210 = vld [vmem:[#allocation8 + $0x128] sm:$0xf]
    %v211 = vld [vmem:[#allocation8 + $0x130] sm:$0xf]
    %v212 = vld [vmem:[#allocation8 + $0x138] sm:$0xf]
    %v213 = vld [vmem:[#allocation8 + $0x140] sm:$0xf]
    %v214 = vld [vmem:[#allocation8 + $0x148] sm:$0xf]
    %v215 = vld [vmem:[#allocation8 + $0x150] sm:$0xf]
    %v216 = vld [vmem:[#allocation8 + $0x158] sm:$0xf]
    %v217 = vld [vmem:[#allocation8 + $0x160] sm:$0xf]
    %v218 = vld [vmem:[#allocation8 + $0x168] sm:$0xf]
    %v219 = vld [vmem:[#allocation8 + $0x170] sm:$0xf]
    %v220 = vld [vmem:[#allocation8 + $0x178] sm:$0xf]
    %v221 = vld [vmem:[%s2 + $0x2] sm:$0x1]
    %v223 = vlaneseq
    %v224 = vshrl.u32 %v223, 7
    %v225 = vsub.s32 0, %v224
    %v226 = vrot.slane %v204, %v225
    %v227 = vlaneseq
    %v228 = vshrl.u32 %v227, 7
    %v229 = vsub.s32 1, %v228
    %v230 = vrot.slane %v204, %v229
    %v235 = vunpack.c.l.b16 %v186
    %v236 = vunpack.c.l.b16 %v187
    %v237 = vpack.c.b16 %v236, %v235
    %v255 = vunpack.c.l.b16 %v188
    %v256 = vunpack.c.h.b16 %v188
    %v257 = vunpack.c.l.b16 %v189
    %v258 = vunpack.c.h.b16 %v189
    %v259 = vunpack.c.l.b16 %v190
    %v260 = vunpack.c.h.b16 %v190
    %v261 = vunpack.c.l.b16 %v191
    %v262 = vunpack.c.h.b16 %v191
    %v263 = vunpack.c.l.b16 %v192
    %v264 = vunpack.c.h.b16 %v192
    %v265 = vunpack.c.l.b16 %v193
    %v266 = vunpack.c.h.b16 %v193
    %v267 = vunpack.c.l.b16 %v194
    %v268 = vunpack.c.h.b16 %v194
    %v269 = vunpack.c.l.b16 %v195
    %v270 = vunpack.c.h.b16 %v195
    %v271 = vunpack.c.l.b16 %v196
    %v272 = vunpack.c.h.b16 %v196
    %v273 = vunpack.c.l.b16 %v197
    %v274 = vunpack.c.h.b16 %v197
    %v275 = vunpack.c.l.b16 %v198
    %v276 = vunpack.c.h.b16 %v198
    %v277 = vunpack.c.l.b16 %v199
    %v278 = vunpack.c.h.b16 %v199
    %v279 = vunpack.c.l.b16 %v200
    %v280 = vunpack.c.h.b16 %v200
    %v281 = vunpack.c.l.b16 %v201
    %v282 = vunpack.c.h.b16 %v201
    %v283 = vunpack.c.l.b16 %v202
    %v284 = vunpack.c.h.b16 %v202
    %v285 = vunpack.c.l.b16 %v203
    %v286 = vunpack.c.h.b16 %v203
    %v287 = vpack.c.b16 %v257, %v255
    %v288 = vpack.c.b16 %v258, %v256
    %v289 = vpack.c.b16 %v261, %v259
    %v290 = vpack.c.b16 %v262, %v260
    %v291 = vpack.c.b16 %v265, %v263
    %v292 = vpack.c.b16 %v266, %v264
    %v293 = vpack.c.b16 %v269, %v267
    %v294 = vpack.c.b16 %v270, %v268
    %v295 = vpack.c.b16 %v273, %v271
    %v296 = vpack.c.b16 %v274, %v272
    %v297 = vpack.c.b16 %v277, %v275
    %v298 = vpack.c.b16 %v278, %v276
    %v299 = vpack.c.b16 %v281, %v279
    %v300 = vpack.c.b16 %v282, %v280
    %v301 = vpack.c.b16 %v285, %v283
    %v302 = vpack.c.b16 %v286, %v284
    %319 = vmatprep.subr.bf16.mxu0 %v288
    %320 = vmatpush1.bf16.msra.mxu0 %v287
    %321 = vmatprep.subr.bf16.mxu0 %v290
    %322 = vmatpush1.bf16.msra.mxu0 %v289
    %323 = vmatprep.subr.bf16.mxu0 %v292
    %324 = vmatpush1.bf16.msra.mxu0 %v291
    %325 = vmatprep.subr.bf16.mxu0 %v294
    %326 = vmatpush1.bf16.msra.mxu0 %v293
    %327 = vmatprep.subr.bf16.mxu0 %v296
    %328 = vmatpush1.bf16.msra.mxu0 %v295
    %329 = vmatprep.subr.bf16.mxu0 %v298
    %330 = vmatpush1.bf16.msra.mxu0 %v297
    %331 = vmatprep.subr.bf16.mxu0 %v300
    %332 = vmatpush1.bf16.msra.mxu0 %v299
    %333 = vmatprep.subr.bf16.mxu0 %v302
    %334 = vmatpush1.bf16.msra.mxu0 %v301
    %335 = vmatprep.subr.bf16.mxu0 0
    %336 = vmatpush1.bf16.msra.mxu0 0
    %337 = vmatprep.subr.bf16.mxu0 0
    %338 = vmatpush1.bf16.msra.mxu0 0
    %339 = vmatprep.subr.bf16.mxu0 0
    %340 = vmatpush1.bf16.msra.mxu0 0
    %341 = vmatprep.subr.bf16.mxu0 0
    %342 = vmatpush1.bf16.msra.mxu0 0
    %343 = vmatprep.subr.bf16.mxu0 0
    %344 = vmatpush1.bf16.msra.mxu0 0
    %345 = vmatprep.subr.bf16.mxu0 0
    %346 = vmatpush1.bf16.msra.mxu0 0
    %347 = vmatprep.subr.bf16.mxu0 0
    %348 = vmatpush1.bf16.msra.mxu0 0
    %349 = vmatprep.subr.bf16.mxu0 0
    %350 = vmatpush1.bf16.msra.mxu0 0
    %351 = vmatprep.mubr.bf16.mxu0 0
    %352 = vmatmul.mubr.bf16.gmra.mrb[0].mxu0 %v237
    %v353 = vpop.f32.mrb[0].mxu0
    %v354 = vadd.f32 %v226, %v353
    %v355 = vpop.f32.mrb[0].mxu0
    %v356 = vadd.f32 %v230, %v355
    %v357 = vpop.f32.mrb[0].mxu0
    %v358 = vadd.f32 %v226, %v357
    %v359 = vpop.f32.mrb[0].mxu0
    %v360 = vadd.f32 %v230, %v359
    %361 = vdwg.mxu0
    %v362 = vmax.f32 %v354, 0.0
    %v363 = vmax.f32 %v358, 0.0
    %v364 = vpack.c.bf16 %v363, %v362
    %v366 = vlaneseq
    %v367 = vshrl.u32 %v366, 7
    %v368 = vsub.s32 0, %v367
    %v369 = vrot.slane %v221, %v368
    %v387 = vunpack.c.l.b16 %v205
    %v388 = vunpack.c.l.b16 %v206
    %v389 = vunpack.c.l.b16 %v207
    %v390 = vunpack.c.l.b16 %v208
    %v391 = vunpack.c.l.b16 %v209
    %v392 = vunpack.c.l.b16 %v210
    %v393 = vunpack.c.l.b16 %v211
    %v394 = vunpack.c.l.b16 %v212
    %v395 = vunpack.c.l.b16 %v213
    %v396 = vunpack.c.l.b16 %v214
    %v397 = vunpack.c.l.b16 %v215
    %v398 = vunpack.c.l.b16 %v216
    %v399 = vunpack.c.l.b16 %v217
    %v400 = vunpack.c.l.b16 %v218
    %v401 = vunpack.c.l.b16 %v219
    %v402 = vunpack.c.l.b16 %v220
    %v403 = vpack.c.b16 %v388, %v387
    %v404 = vpack.c.b16 %v390, %v389
    %v405 = vpack.c.b16 %v392, %v391
    %v406 = vpack.c.b16 %v394, %v393
    %v407 = vpack.c.b16 %v396, %v395
    %v408 = vpack.c.b16 %v398, %v397
    %v409 = vpack.c.b16 %v400, %v399
    %v410 = vpack.c.b16 %v402, %v401
    %419 = vmatprep.subr.bf16.mxu0 0
    %420 = vmatpush1.bf16.msra.mxu0 %v403
    %421 = vmatprep.subr.bf16.mxu0 0
    %422 = vmatpush1.bf16.msra.mxu0 %v404
    %423 = vmatprep.subr.bf16.mxu0 0
    %424 = vmatpush1.bf16.msra.mxu0 %v405
    %425 = vmatprep.subr.bf16.mxu0 0
    %426 = vmatpush1.bf16.msra.mxu0 %v406
    %427 = vmatprep.subr.bf16.mxu0 0
    %428 = vmatpush1.bf16.msra.mxu0 %v407
    %429 = vmatprep.subr.bf16.mxu0 0
    %430 = vmatpush1.bf16.msra.mxu0 %v408
    %431 = vmatprep.subr.bf16.mxu0 0
    %432 = vmatpush1.bf16.msra.mxu0 %v409
    %433 = vmatprep.subr.bf16.mxu0 0
    %434 = vmatpush1.bf16.msra.mxu0 %v410
    %435 = vmatprep.subr.bf16.mxu0 0
    %436 = vmatpush1.bf16.msra.mxu0 0
    %437 = vmatprep.subr.bf16.mxu0 0
    %438 = vmatpush1.bf16.msra.mxu0 0
    %439 = vmatprep.subr.bf16.mxu0 0
    %440 = vmatpush1.bf16.msra.mxu0 0
    %441 = vmatprep.subr.bf16.mxu0 0
    %442 = vmatpush1.bf16.msra.mxu0 0
    %443 = vmatprep.subr.bf16.mxu0 0
    %444 = vmatpush1.bf16.msra.mxu0 0
    %445 = vmatprep.subr.bf16.mxu0 0
    %446 = vmatpush1.bf16.msra.mxu0 0
    %447 = vmatprep.subr.bf16.mxu0 0
    %448 = vmatpush1.bf16.msra.mxu0 0
    %449 = vmatprep.subr.bf16.mxu0 0
    %450 = vmatpush1.bf16.msra.mxu0 0
    %451 = vmatprep.mubr.bf16.mxu0 0
    %452 = vmatmul.mubr.bf16.gmra.mrb[0].mxu0 %v364
    %v453 = vpop.f32.mrb[0].mxu0
    %v454 = vadd.f32 %v369, %v453
    %v455 = vpop.f32.mrb[0].mxu0
    %v456 = vpop.f32.mrb[0].mxu0
    %v457 = vadd.f32 %v369, %v456
    %v458 = vpop.f32.mrb[0].mxu0
    %459 = vdwg.mxu0
    %v460 = vadd.f32 %v454, %v356
    %v461 = vadd.f32 %v457, %v360
    %v462 = vmax.f32 %v460, 0.0
    %v463 = vmax.f32 %v461, 0.0
    %v464 = vpack.c.bf16 %v463, %v462
    %v465 = vld [vmem:[#allocation8 + $0x80] sm:$0xff]
    %v466 = vld [vmem:[#allocation8 + $0x88] sm:$0xff]
    %v467 = vld [vmem:[#allocation8 + $0x90] sm:$0xff]
    %v468 = vld [vmem:[#allocation8 + $0x98] sm:$0xff]
    %v469 = vld [vmem:[#allocation8 + $0xa0] sm:$0xff]
    %v470 = vld [vmem:[#allocation8 + $0xa8] sm:$0xff]
    %v471 = vld [vmem:[#allocation8 + $0xb0] sm:$0xff]
    %v472 = vld [vmem:[#allocation8 + $0xb8] sm:$0xff]
    %v473 = vld [vmem:[#allocation8 + $0xc0] sm:$0xff]
    %v474 = vld [vmem:[#allocation8 + $0xc8] sm:$0xff]
    %v475 = vld [vmem:[#allocation8 + $0xd0] sm:$0xff]
    %v476 = vld [vmem:[#allocation8 + $0xd8] sm:$0xff]
    %v477 = vld [vmem:[#allocation8 + $0xe0] sm:$0xff]
    %v478 = vld [vmem:[#allocation8 + $0xe8] sm:$0xff]
    %v479 = vld [vmem:[#allocation8 + $0xf0] sm:$0xff]
    %v480 = vld [vmem:[#allocation8 + $0xf8] sm:$0xff]
    %v481 = vld [vmem:[%s2 + $0x3] sm:$0x3]
    %v482 = vld [vmem:[#allocation8 + $0x104] sm:$0xf]
    %v483 = vld [vmem:[#allocation8 + $0x10c] sm:$0xf]
    %v484 = vld [vmem:[#allocation8 + $0x114] sm:$0xf]
    %v485 = vld [vmem:[#allocation8 + $0x11c] sm:$0xf]
    %v486 = vld [vmem:[#allocation8 + $0x124] sm:$0xf]
    %v487 = vld [vmem:[#allocation8 + $0x12c] sm:$0xf]
    %v488 = vld [vmem:[#allocation8 + $0x134] sm:$0xf]
    %v489 = vld [vmem:[#allocation8 + $0x13c] sm:$0xf]
    %v490 = vld [vmem:[#allocation8 + $0x144] sm:$0xf]
    %v491 = vld [vmem:[#allocation8 + $0x14c] sm:$0xf]
    %v492 = vld [vmem:[#allocation8 + $0x154] sm:$0xf]
    %v493 = vld [vmem:[#allocation8 + $0x15c] sm:$0xf]
    %v494 = vld [vmem:[#allocation8 + $0x164] sm:$0xf]
    %v495 = vld [vmem:[#allocation8 + $0x16c] sm:$0xf]
    %v496 = vld [vmem:[#allocation8 + $0x174] sm:$0xf]
    %v497 = vld [vmem:[#allocation8 + $0x17c] sm:$0xf]
    %v498 = vld [vmem:[%s2 + $0x5] sm:$0x1]
    %v500 = vlaneseq
    %v501 = vshrl.u32 %v500, 7
    %v502 = vsub.s32 0, %v501
    %v503 = vrot.slane %v481, %v502
    %v504 = vlaneseq
    %v505 = vshrl.u32 %v504, 7
    %v506 = vsub.s32 1, %v505
    %v507 = vrot.slane %v481, %v506
    %v526 = vunpack.c.l.b16 %v465
    %v527 = vunpack.c.h.b16 %v465
    %v528 = vunpack.c.l.b16 %v466
    %v529 = vunpack.c.h.b16 %v466
    %v530 = vunpack.c.l.b16 %v467
    %v531 = vunpack.c.h.b16 %v467
    %v532 = vunpack.c.l.b16 %v468
    %v533 = vunpack.c.h.b16 %v468
    %v534 = vunpack.c.l.b16 %v469
    %v535 = vunpack.c.h.b16 %v469
    %v536 = vunpack.c.l.b16 %v470
    %v537 = vunpack.c.h.b16 %v470
    %v538 = vunpack.c.l.b16 %v471
    %v539 = vunpack.c.h.b16 %v471
    %v540 = vunpack.c.l.b16 %v472
    %v541 = vunpack.c.h.b16 %v472
    %v542 = vunpack.c.l.b16 %v473
    %v543 = vunpack.c.h.b16 %v473
    %v544 = vunpack.c.l.b16 %v474
    %v545 = vunpack.c.h.b16 %v474
    %v546 = vunpack.c.l.b16 %v475
    %v547 = vunpack.c.h.b16 %v475
    %v548 = vunpack.c.l.b16 %v476
    %v549 = vunpack.c.h.b16 %v476
    %v550 = vunpack.c.l.b16 %v477
    %v551 = vunpack.c.h.b16 %v477
    %v552 = vunpack.c.l.b16 %v478
    %v553 = vunpack.c.h.b16 %v478
    %v554 = vunpack.c.l.b16 %v479
    %v555 = vunpack.c.h.b16 %v479
    %v556 = vunpack.c.l.b16 %v480
    %v557 = vunpack.c.h.b16 %v480
    %v558 = vpack.c.b16 %v528, %v526
    %v559 = vpack.c.b16 %v529, %v527
    %v560 = vpack.c.b16 %v532, %v530
    %v561 = vpack.c.b16 %v533, %v531
    %v562 = vpack.c.b16 %v536, %v534
    %v563 = vpack.c.b16 %v537, %v535
    %v564 = vpack.c.b16 %v540, %v538
    %v565 = vpack.c.b16 %v541, %v539
    %v566 = vpack.c.b16 %v544, %v542
    %v567 = vpack.c.b16 %v545, %v543
    %v568 = vpack.c.b16 %v548, %v546
    %v569 = vpack.c.b16 %v549, %v547
    %v570 = vpack.c.b16 %v552, %v550
    %v571 = vpack.c.b16 %v553, %v551
    %v572 = vpack.c.b16 %v556, %v554
    %v573 = vpack.c.b16 %v557, %v555
    %590 = vmatprep.subr.bf16.mxu0 %v559
    %591 = vmatpush1.bf16.msra.mxu0 %v558
    %592 = vmatprep.subr.bf16.mxu0 %v561
    %593 = vmatpush1.bf16.msra.mxu0 %v560
    %594 = vmatprep.subr.bf16.mxu0 %v563
    %595 = vmatpush1.bf16.msra.mxu0 %v562
    %596 = vmatprep.subr.bf16.mxu0 %v565
    %597 = vmatpush1.bf16.msra.mxu0 %v564
    %598 = vmatprep.subr.bf16.mxu0 %v567
    %599 = vmatpush1.bf16.msra.mxu0 %v566
    %600 = vmatprep.subr.bf16.mxu0 %v569
    %601 = vmatpush1.bf16.msra.mxu0 %v568
    %602 = vmatprep.subr.bf16.mxu0 %v571
    %603 = vmatpush1.bf16.msra.mxu0 %v570
    %604 = vmatprep.subr.bf16.mxu0 %v573
    %605 = vmatpush1.bf16.msra.mxu0 %v572
    %606 = vmatprep.subr.bf16.mxu0 0
    %607 = vmatpush1.bf16.msra.mxu0 0
    %608 = vmatprep.subr.bf16.mxu0 0
    %609 = vmatpush1.bf16.msra.mxu0 0
    %610 = vmatprep.subr.bf16.mxu0 0
    %611 = vmatpush1.bf16.msra.mxu0 0
    %612 = vmatprep.subr.bf16.mxu0 0
    %613 = vmatpush1.bf16.msra.mxu0 0
    %614 = vmatprep.subr.bf16.mxu0 0
    %615 = vmatpush1.bf16.msra.mxu0 0
    %616 = vmatprep.subr.bf16.mxu0 0
    %617 = vmatpush1.bf16.msra.mxu0 0
    %618 = vmatprep.subr.bf16.mxu0 0
    %619 = vmatpush1.bf16.msra.mxu0 0
    %620 = vmatprep.subr.bf16.mxu0 0
    %621 = vmatpush1.bf16.msra.mxu0 0
    %622 = vmatprep.mubr.bf16.mxu0 0
    %623 = vmatmul.mubr.bf16.gmra.mrb[0].mxu0 %v464
    %v624 = vpop.f32.mrb[0].mxu0
    %v625 = vadd.f32 %v503, %v624
    %v626 = vpop.f32.mrb[0].mxu0
    %v627 = vadd.f32 %v507, %v626
    %v628 = vpop.f32.mrb[0].mxu0
    %v629 = vadd.f32 %v503, %v628
    %v630 = vpop.f32.mrb[0].mxu0
    %v631 = vadd.f32 %v507, %v630
    %632 = vdwg.mxu0
    %v633 = vmax.f32 %v625, 0.0
    %v634 = vmax.f32 %v629, 0.0
    %v635 = vpack.c.bf16 %v634, %v633
    %v637 = vlaneseq
    %v638 = vshrl.u32 %v637, 7
    %v639 = vsub.s32 0, %v638
    %v640 = vrot.slane %v498, %v639
    %v658 = vunpack.c.l.b16 %v482
    %v659 = vunpack.c.l.b16 %v483
    %v660 = vunpack.c.l.b16 %v484
    %v661 = vunpack.c.l.b16 %v485
    %v662 = vunpack.c.l.b16 %v486
    %v663 = vunpack.c.l.b16 %v487
    %v664 = vunpack.c.l.b16 %v488
    %v665 = vunpack.c.l.b16 %v489
    %v666 = vunpack.c.l.b16 %v490
    %v667 = vunpack.c.l.b16 %v491
    %v668 = vunpack.c.l.b16 %v492
    %v669 = vunpack.c.l.b16 %v493
    %v670 = vunpack.c.l.b16 %v494
    %v671 = vunpack.c.l.b16 %v495
    %v672 = vunpack.c.l.b16 %v496
    %v673 = vunpack.c.l.b16 %v497
    %v674 = vpack.c.b16 %v659, %v658
    %v675 = vpack.c.b16 %v661, %v660
    %v676 = vpack.c.b16 %v663, %v662
    %v677 = vpack.c.b16 %v665, %v664
    %v678 = vpack.c.b16 %v667, %v666
    %v679 = vpack.c.b16 %v669, %v668
    %v680 = vpack.c.b16 %v671, %v670
    %v681 = vpack.c.b16 %v673, %v672
    %690 = vmatprep.subr.bf16.mxu0 0
    %691 = vmatpush1.bf16.msra.mxu0 %v674
    %692 = vmatprep.subr.bf16.mxu0 0
    %693 = vmatpush1.bf16.msra.mxu0 %v675
    %694 = vmatprep.subr.bf16.mxu0 0
    %695 = vmatpush1.bf16.msra.mxu0 %v676
    %696 = vmatprep.subr.bf16.mxu0 0
    %697 = vmatpush1.bf16.msra.mxu0 %v677
    %698 = vmatprep.subr.bf16.mxu0 0
    %699 = vmatpush1.bf16.msra.mxu0 %v678
    %700 = vmatprep.subr.bf16.mxu0 0
    %701 = vmatpush1.bf16.msra.mxu0 %v679
    %702 = vmatprep.subr.bf16.mxu0 0
    %703 = vmatpush1.bf16.msra.mxu0 %v680
    %704 = vmatprep.subr.bf16.mxu0 0
    %705 = vmatpush1.bf16.msra.mxu0 %v681
    %706 = vmatprep.subr.bf16.mxu0 0
    %707 = vmatpush1.bf16.msra.mxu0 0
    %708 = vmatprep.subr.bf16.mxu0 0
    %709 = vmatpush1.bf16.msra.mxu0 0
    %710 = vmatprep.subr.bf16.mxu0 0
    %711 = vmatpush1.bf16.msra.mxu0 0
    %712 = vmatprep.subr.bf16.mxu0 0
    %713 = vmatpush1.bf16.msra.mxu0 0
    %714 = vmatprep.subr.bf16.mxu0 0
    %715 = vmatpush1.bf16.msra.mxu0 0
    %716 = vmatprep.subr.bf16.mxu0 0
    %717 = vmatpush1.bf16.msra.mxu0 0
    %718 = vmatprep.subr.bf16.mxu0 0
    %719 = vmatpush1.bf16.msra.mxu0 0
    %720 = vmatprep.subr.bf16.mxu0 0
    %721 = vmatpush1.bf16.msra.mxu0 0
    %722 = vmatprep.mubr.bf16.mxu0 0
    %723 = vmatmul.mubr.bf16.gmra.mrb[0].mxu0 %v635
    %v724 = vpop.f32.mrb[0].mxu0
    %v725 = vadd.f32 %v640, %v724
    %v726 = vpop.f32.mrb[0].mxu0
    %v727 = vpop.f32.mrb[0].mxu0
    %v728 = vadd.f32 %v640, %v727
    %v729 = vpop.f32.mrb[0].mxu0
    %730 = vdwg.mxu0
    %v731 = vadd.f32 %v725, %v627
    %v732 = vadd.f32 %v728, %v631
    %v733 = vmax.f32 %v731, 0.0
    %v734 = vmax.f32 %v732, 0.0
    %v735 = vpack.c.bf16 %v734, %v733
    %s736 = smul.u32 4, 16
    %s737 = smul.u32 %s736, 4
    %s738 = sshll.u32 %s737, 4
    %739 = dma.done [#allocation7], %s738
    %s740 = smul.u32 4, 32
    %s741 = smul.u32 %s740, 2
    %s742 = sshll.u32 %s741, 4
    %743 = dma.done %s69, %s742
    %v744 = vld [vmem:[#allocation2] sm:$0xff]
    %v745 = vld [vmem:[#allocation2 + $0x8] sm:$0xff]
    %v746 = vld [vmem:[#allocation2 + $0x10] sm:$0xff]
    %v747 = vld [vmem:[#allocation2 + $0x18] sm:$0xff]
    %v748 = vld [vmem:[#allocation2 + $0x20] sm:$0xff]
    %v749 = vld [vmem:[#allocation2 + $0x28] sm:$0xff]
    %v750 = vld [vmem:[#allocation2 + $0x30] sm:$0xff]
    %v751 = vld [vmem:[#allocation2 + $0x38] sm:$0xff]
    %v752 = vld [vmem:[#allocation2 + $0x40] sm:$0xff]
    %v753 = vld [vmem:[#allocation2 + $0x48] sm:$0xff]
    %v754 = vld [vmem:[#allocation2 + $0x50] sm:$0xff]
    %v755 = vld [vmem:[#allocation2 + $0x58] sm:$0xff]
    %v756 = vld [vmem:[#allocation2 + $0x60] sm:$0xff]
    %v757 = vld [vmem:[#allocation2 + $0x68] sm:$0xff]
    %v758 = vld [vmem:[#allocation2 + $0x70] sm:$0xff]
    %v759 = vld [vmem:[#allocation2 + $0x78] sm:$0xff]
    %v760 = vld [vmem:[#allocation2 + $0x80] sm:$0xff]
    %v761 = vld [vmem:[#allocation2 + $0x88] sm:$0xff]
    %v762 = vld [vmem:[#allocation2 + $0x90] sm:$0xff]
    %v763 = vld [vmem:[#allocation2 + $0x98] sm:$0xff]
    %v764 = vld [vmem:[#allocation2 + $0xa0] sm:$0xff]
    %v765 = vld [vmem:[#allocation2 + $0xa8] sm:$0xff]
    %v766 = vld [vmem:[#allocation2 + $0xb0] sm:$0xff]
    %v767 = vld [vmem:[#allocation2 + $0xb8] sm:$0xff]
    %v768 = vld [vmem:[#allocation2 + $0xc0] sm:$0xff]
    %v769 = vld [vmem:[#allocation2 + $0xc8] sm:$0xff]
    %v770 = vld [vmem:[#allocation2 + $0xd0] sm:$0xff]
    %v771 = vld [vmem:[#allocation2 + $0xd8] sm:$0xff]
    %v772 = vld [vmem:[#allocation2 + $0xe0] sm:$0xff]
    %v773 = vld [vmem:[#allocation2 + $0xe8] sm:$0xff]
    %v774 = vld [vmem:[#allocation2 + $0xf0] sm:$0xff]
    %v775 = vld [vmem:[#allocation2 + $0xf8] sm:$0xff]
    %v776 = vld [vmem:[%s2 + $0x6] sm:$0xf]
    %v777 = vld [vmem:[#allocation3] sm:$0xff]
    %v778 = vld [vmem:[#allocation3 + $0x8] sm:$0xff]
    %v779 = vld [vmem:[#allocation3 + $0x10] sm:$0xff]
    %v780 = vld [vmem:[#allocation3 + $0x18] sm:$0xff]
    %v781 = vld [vmem:[#allocation3 + $0x20] sm:$0xff]
    %v782 = vld [vmem:[#allocation3 + $0x28] sm:$0xff]
    %v783 = vld [vmem:[#allocation3 + $0x30] sm:$0xff]
    %v784 = vld [vmem:[#allocation3 + $0x38] sm:$0xff]
    %v785 = vld [vmem:[#allocation3 + $0x40] sm:$0xff]
    %v786 = vld [vmem:[#allocation3 + $0x48] sm:$0xff]
    %v787 = vld [vmem:[#allocation3 + $0x50] sm:$0xff]
    %v788 = vld [vmem:[#allocation3 + $0x58] sm:$0xff]
    %v789 = vld [vmem:[#allocation3 + $0x60] sm:$0xff]
    %v790 = vld [vmem:[#allocation3 + $0x68] sm:$0xff]
    %v791 = vld [vmem:[#allocation3 + $0x70] sm:$0xff]
    %v792 = vld [vmem:[#allocation3 + $0x78] sm:$0xff]
    %v793 = vld [vmem:[#allocation3 + $0x80] sm:$0xff]
    %v794 = vld [vmem:[#allocation3 + $0x88] sm:$0xff]
    %v795 = vld [vmem:[#allocation3 + $0x90] sm:$0xff]
    %v796 = vld [vmem:[#allocation3 + $0x98] sm:$0xff]
    %v797 = vld [vmem:[#allocation3 + $0xa0] sm:$0xff]
    %v798 = vld [vmem:[#allocation3 + $0xa8] sm:$0xff]
    %v799 = vld [vmem:[#allocation3 + $0xb0] sm:$0xff]
    %v800 = vld [vmem:[#allocation3 + $0xb8] sm:$0xff]
    %v801 = vld [vmem:[#allocation3 + $0xc0] sm:$0xff]
    %v802 = vld [vmem:[#allocation3 + $0xc8] sm:$0xff]
    %v803 = vld [vmem:[#allocation3 + $0xd0] sm:$0xff]
    %v804 = vld [vmem:[#allocation3 + $0xd8] sm:$0xff]
    %v805 = vld [vmem:[#allocation3 + $0xe0] sm:$0xff]
    %v806 = vld [vmem:[#allocation3 + $0xe8] sm:$0xff]
    %v807 = vld [vmem:[#allocation3 + $0xf0] sm:$0xff]
    %v808 = vld [vmem:[#allocation3 + $0xf8] sm:$0xff]
    %v809 = vld [vmem:[%s2 + $0xa] sm:$0x3]
    %v811 = vlaneseq
    %v812 = vshrl.u32 %v811, 7
    %v813 = vsub.s32 0, %v812
    %v814 = vrot.slane %v776, %v813
    %v815 = vlaneseq
    %v816 = vshrl.u32 %v815, 7
    %v817 = vsub.s32 1, %v816
    %v818 = vrot.slane %v776, %v817
    %v819 = vlaneseq
    %v820 = vshrl.u32 %v819, 7
    %v821 = vsub.s32 2, %v820
    %v822 = vrot.slane %v776, %v821
    %v823 = vlaneseq
    %v824 = vshrl.u32 %v823, 7
    %v825 = vsub.s32 3, %v824
    %v826 = vrot.slane %v776, %v825
    %831 = vmatprep.subr.bf16.mxu0 %v745
    %832 = vmatpush1.bf16.msra.mxu0 %v744
    %833 = vmatprep.subr.bf16.mxu0 %v749
    %834 = vmatpush1.bf16.msra.mxu0 %v748
    %835 = vmatprep.subr.bf16.mxu0 %v753
    %836 = vmatpush1.bf16.msra.mxu0 %v752
    %837 = vmatprep.subr.bf16.mxu0 %v757
    %838 = vmatpush1.bf16.msra.mxu0 %v756
    %839 = vmatprep.subr.bf16.mxu0 %v761
    %840 = vmatpush1.bf16.msra.mxu0 %v760
    %841 = vmatprep.subr.bf16.mxu0 %v765
    %842 = vmatpush1.bf16.msra.mxu0 %v764
    %843 = vmatprep.subr.bf16.mxu0 %v769
    %844 = vmatpush1.bf16.msra.mxu0 %v768
    %845 = vmatprep.subr.bf16.mxu0 %v773
    %846 = vmatpush1.bf16.msra.mxu0 %v772
    %847 = vmatprep.subr.bf16.mxu0 0
    %848 = vmatpush1.bf16.msra.mxu0 0
    %849 = vmatprep.subr.bf16.mxu0 0
    %850 = vmatpush1.bf16.msra.mxu0 0
    %851 = vmatprep.subr.bf16.mxu0 0
    %852 = vmatpush1.bf16.msra.mxu0 0
    %853 = vmatprep.subr.bf16.mxu0 0
    %854 = vmatpush1.bf16.msra.mxu0 0
    %855 = vmatprep.subr.bf16.mxu0 0
    %856 = vmatpush1.bf16.msra.mxu0 0
    %857 = vmatprep.subr.bf16.mxu0 0
    %858 = vmatpush1.bf16.msra.mxu0 0
    %859 = vmatprep.subr.bf16.mxu0 0
    %860 = vmatpush1.bf16.msra.mxu0 0
    %861 = vmatprep.subr.bf16.mxu0 0
    %862 = vmatpush1.bf16.msra.mxu0 0
    %863 = vmatprep.mubr.bf16.mxu0 0
    %864 = vmatmul.mubr.bf16.gmra.mrb[0].mxu0 %v735
    %v865 = vpop.f32.mrb[0].mxu0
    %v866 = vadd.f32 %v814, %v865
    %v867 = vpop.f32.mrb[0].mxu0
    %v868 = vadd.f32 %v818, %v867
    %v869 = vpop.f32.mrb[0].mxu0
    %v870 = vadd.f32 %v814, %v869
    %v871 = vpop.f32.mrb[0].mxu0
    %v872 = vadd.f32 %v818, %v871
    %873 = vdwg.mxu0
    %874 = vmatprep.subr.bf16.mxu0 %v747
    %875 = vmatpush1.bf16.msra.mxu0 %v746
    %876 = vmatprep.subr.bf16.mxu0 %v751
    %877 = vmatpush1.bf16.msra.mxu0 %v750
    %878 = vmatprep.subr.bf16.mxu0 %v755
    %879 = vmatpush1.bf16.msra.mxu0 %v754
    %880 = vmatprep.subr.bf16.mxu0 %v759
    %881 = vmatpush1.bf16.msra.mxu0 %v758
    %882 = vmatprep.subr.bf16.mxu0 %v763
    %883 = vmatpush1.bf16.msra.mxu0 %v762
    %884 = vmatprep.subr.bf16.mxu0 %v767
    %885 = vmatpush1.bf16.msra.mxu0 %v766
    %886 = vmatprep.subr.bf16.mxu0 %v771
    %887 = vmatpush1.bf16.msra.mxu0 %v770
    %888 = vmatprep.subr.bf16.mxu0 %v775
    %889 = vmatpush1.bf16.msra.mxu0 %v774
    %890 = vmatprep.subr.bf16.mxu0 0
    %891 = vmatpush1.bf16.msra.mxu0 0
    %892 = vmatprep.subr.bf16.mxu0 0
    %893 = vmatpush1.bf16.msra.mxu0 0
    %894 = vmatprep.subr.bf16.mxu0 0
    %895 = vmatpush1.bf16.msra.mxu0 0
    %896 = vmatprep.subr.bf16.mxu0 0
    %897 = vmatpush1.bf16.msra.mxu0 0
    %898 = vmatprep.subr.bf16.mxu0 0
    %899 = vmatpush1.bf16.msra.mxu0 0
    %900 = vmatprep.subr.bf16.mxu0 0
    %901 = vmatpush1.bf16.msra.mxu0 0
    %902 = vmatprep.subr.bf16.mxu0 0
    %903 = vmatpush1.bf16.msra.mxu0 0
    %904 = vmatprep.subr.bf16.mxu0 0
    %905 = vmatpush1.bf16.msra.mxu0 0
    %906 = vmatprep.mubr.bf16.mxu0 0
    %907 = vmatmul.mubr.bf16.gmra.mrb[0].mxu0 %v735
    %v908 = vpop.f32.mrb[0].mxu0
    %v909 = vadd.f32 %v822, %v908
    %v910 = vpop.f32.mrb[0].mxu0
    %v911 = vadd.f32 %v826, %v910
    %v912 = vpop.f32.mrb[0].mxu0
    %v913 = vadd.f32 %v822, %v912
    %v914 = vpop.f32.mrb[0].mxu0
    %v915 = vadd.f32 %v826, %v914
    %916 = vdwg.mxu0
    %v917 = vmax.f32 %v866, 0.0
    %v918 = vmax.f32 %v868, 0.0
    %v919 = vmax.f32 %v870, 0.0
    %v920 = vmax.f32 %v872, 0.0
    %v921 = vpack.c.bf16 %v919, %v917
    %v922 = vpack.c.bf16 %v920, %v918
    %v924 = vlaneseq
    %v925 = vshrl.u32 %v924, 7
    %v926 = vsub.s32 0, %v925
    %v927 = vrot.slane %v809, %v926
    %v928 = vlaneseq
    %v929 = vshrl.u32 %v928, 7
    %v930 = vsub.s32 1, %v929
    %v931 = vrot.slane %v809, %v930
    %934 = vmatprep.subr.bf16.mxu0 %v778
    %935 = vmatpush1.bf16.msra.mxu0 %v777
    %936 = vmatprep.subr.bf16.mxu0 %v780
    %937 = vmatpush1.bf16.msra.mxu0 %v779
    %938 = vmatprep.subr.bf16.mxu0 %v782
    %939 = vmatpush1.bf16.msra.mxu0 %v781
    %940 = vmatprep.subr.bf16.mxu0 %v784
    %941 = vmatpush1.bf16.msra.mxu0 %v783
    %942 = vmatprep.subr.bf16.mxu0 %v786
    %943 = vmatpush1.bf16.msra.mxu0 %v785
    %944 = vmatprep.subr.bf16.mxu0 %v788
    %945 = vmatpush1.bf16.msra.mxu0 %v787
    %946 = vmatprep.subr.bf16.mxu0 %v790
    %947 = vmatpush1.bf16.msra.mxu0 %v789
    %948 = vmatprep.subr.bf16.mxu0 %v792
    %949 = vmatpush1.bf16.msra.mxu0 %v791
    %950 = vmatprep.subr.bf16.mxu0 %v794
    %951 = vmatpush1.bf16.msra.mxu0 %v793
    %952 = vmatprep.subr.bf16.mxu0 %v796
    %953 = vmatpush1.bf16.msra.mxu0 %v795
    %954 = vmatprep.subr.bf16.mxu0 %v798
    %955 = vmatpush1.bf16.msra.mxu0 %v797
    %956 = vmatprep.subr.bf16.mxu0 %v800
    %957 = vmatpush1.bf16.msra.mxu0 %v799
    %958 = vmatprep.subr.bf16.mxu0 %v802
    %959 = vmatpush1.bf16.msra.mxu0 %v801
    %960 = vmatprep.subr.bf16.mxu0 %v804
    %961 = vmatpush1.bf16.msra.mxu0 %v803
    %962 = vmatprep.subr.bf16.mxu0 %v806
    %963 = vmatpush1.bf16.msra.mxu0 %v805
    %964 = vmatprep.subr.bf16.mxu0 %v808
    %965 = vmatpush1.bf16.msra.mxu0 %v807
    %966 = vmatprep.mubr.bf16.mxu0 %v922
    %967 = vmatmul.mubr.bf16.gmra.mrb[0].mxu0 %v921
    %v968 = vpop.f32.mrb[0].mxu0
    %v969 = vadd.f32 %v927, %v968
    %v970 = vpop.f32.mrb[0].mxu0
    %v971 = vadd.f32 %v931, %v970
    %v972 = vpop.f32.mrb[0].mxu0
    %v973 = vadd.f32 %v927, %v972
    %v974 = vpop.f32.mrb[0].mxu0
    %v975 = vadd.f32 %v931, %v974
    %976 = vdwg.mxu0
    %v977 = vadd.f32 %v969, %v909
    %v978 = vadd.f32 %v971, %v911
    %v979 = vadd.f32 %v973, %v913
    %v980 = vadd.f32 %v975, %v915
    %v981 = vmax.f32 %v977, 0.0
    %v982 = vmax.f32 %v978, 0.0
    %v983 = vmax.f32 %v979, 0.0
    %v984 = vmax.f32 %v980, 0.0
    %v985 = vpack.c.bf16 %v983, %v981
    %v986 = vpack.c.bf16 %v984, %v982
    %s987 = smul.u32 %s740, 8
    %s988 = sshll.u32 %s987, 4
    %989 = dma.done %s104, %s988
    %s990 = smul.u32 4, 64
    %s991 = smul.u32 %s990, 4
    %s992 = sshll.u32 %s991, 4
    %993 = dma.done %s139, %s992
    %v994 = vld [vmem:[#allocation4] sm:$0xff]
    %v995 = vld [vmem:[#allocation4 + $0x8] sm:$0xff]
    %v996 = vld [vmem:[#allocation4 + $0x10] sm:$0xff]
    %v997 = vld [vmem:[#allocation4 + $0x18] sm:$0xff]
    %v998 = vld [vmem:[#allocation4 + $0x20] sm:$0xff]
    %v999 = vld [vmem:[#allocation4 + $0x28] sm:$0xff]
    %v1000 = vld [vmem:[#allocation4 + $0x30] sm:$0xff]
    %v1001 = vld [vmem:[#allocation4 + $0x38] sm:$0xff]
    %v1002 = vld [vmem:[#allocation4 + $0x40] sm:$0xff]
    %v1003 = vld [vmem:[#allocation4 + $0x48] sm:$0xff]
    %v1004 = vld [vmem:[#allocation4 + $0x50] sm:$0xff]
    %v1005 = vld [vmem:[#allocation4 + $0x58] sm:$0xff]
    %v1006 = vld [vmem:[#allocation4 + $0x60] sm:$0xff]
    %v1007 = vld [vmem:[#allocation4 + $0x68] sm:$0xff]
    %v1008 = vld [vmem:[#allocation4 + $0x70] sm:$0xff]
    %v1009 = vld [vmem:[#allocation4 + $0x78] sm:$0xff]
    %v1010 = vld [vmem:[#allocation4 + $0x80] sm:$0xff]
    %v1011 = vld [vmem:[#allocation4 + $0x88] sm:$0xff]
    %v1012 = vld [vmem:[#allocation4 + $0x90] sm:$0xff]
    %v1013 = vld [vmem:[#allocation4 + $0x98] sm:$0xff]
    %v1014 = vld [vmem:[#allocation4 + $0xa0] sm:$0xff]
    %v1015 = vld [vmem:[#allocation4 + $0xa8] sm:$0xff]
    %v1016 = vld [vmem:[#allocation4 + $0xb0] sm:$0xff]
    %v1017 = vld [vmem:[#allocation4 + $0xb8] sm:$0xff]
    %v1018 = vld [vmem:[#allocation4 + $0xc0] sm:$0xff]
    %v1019 = vld [vmem:[#allocation4 + $0xc8] sm:$0xff]
    %v1020 = vld [vmem:[#allocation4 + $0xd0] sm:$0xff]
    %v1021 = vld [vmem:[#allocation4 + $0xd8] sm:$0xff]
    %v1022 = vld [vmem:[#allocation4 + $0xe0] sm:$0xff]
    %v1023 = vld [vmem:[#allocation4 + $0xe8] sm:$0xff]
    %v1024 = vld [vmem:[#allocation4 + $0xf0] sm:$0xff]
    %v1025 = vld [vmem:[#allocation4 + $0xf8] sm:$0xff]
    %v1026 = vld [vmem:[#allocation4 + $0x100] sm:$0xff]
    %v1027 = vld [vmem:[#allocation4 + $0x108] sm:$0xff]
    %v1028 = vld [vmem:[#allocation4 + $0x110] sm:$0xff]
    %v1029 = vld [vmem:[#allocation4 + $0x118] sm:$0xff]
    %v1030 = vld [vmem:[#allocation4 + $0x120] sm:$0xff]
    %v1031 = vld [vmem:[#allocation4 + $0x128] sm:$0xff]
    %v1032 = vld [vmem:[#allocation4 + $0x130] sm:$0xff]
    %v1033 = vld [vmem:[#allocation4 + $0x138] sm:$0xff]
    %v1034 = vld [vmem:[#allocation4 + $0x140] sm:$0xff]
    %v1035 = vld [vmem:[#allocation4 + $0x148] sm:$0xff]
    %v1036 = vld [vmem:[#allocation4 + $0x150] sm:$0xff]
    %v1037 = vld [vmem:[#allocation4 + $0x158] sm:$0xff]
    %v1038 = vld [vmem:[#allocation4 + $0x160] sm:$0xff]
    %v1039 = vld [vmem:[#allocation4 + $0x168] sm:$0xff]
    %v1040 = vld [vmem:[#allocation4 + $0x170] sm:$0xff]
    %v1041 = vld [vmem:[#allocation4 + $0x178] sm:$0xff]
    %v1042 = vld [vmem:[#allocation4 + $0x180] sm:$0xff]
    %v1043 = vld [vmem:[#allocation4 + $0x188] sm:$0xff]
    %v1044 = vld [vmem:[#allocation4 + $0x190] sm:$0xff]
    %v1045 = vld [vmem:[#allocation4 + $0x198] sm:$0xff]
    %v1046 = vld [vmem:[#allocation4 + $0x1a0] sm:$0xff]
    %v1047 = vld [vmem:[#allocation4 + $0x1a8] sm:$0xff]
    %v1048 = vld [vmem:[#allocation4 + $0x1b0] sm:$0xff]
    %v1049 = vld [vmem:[#allocation4 + $0x1b8] sm:$0xff]
    %v1050 = vld [vmem:[#allocation4 + $0x1c0] sm:$0xff]
    %v1051 = vld [vmem:[#allocation4 + $0x1c8] sm:$0xff]
    %v1052 = vld [vmem:[#allocation4 + $0x1d0] sm:$0xff]
    %v1053 = vld [vmem:[#allocation4 + $0x1d8] sm:$0xff]
    %v1054 = vld [vmem:[#allocation4 + $0x1e0] sm:$0xff]
    %v1055 = vld [vmem:[#allocation4 + $0x1e8] sm:$0xff]
    %v1056 = vld [vmem:[#allocation4 + $0x1f0] sm:$0xff]
    %v1057 = vld [vmem:[#allocation4 + $0x1f8] sm:$0xff]
    %v1058 = vld [vmem:[#allocation4 + $0x200] sm:$0xff]
    %v1059 = vld [vmem:[#allocation4 + $0x208] sm:$0xff]
    %v1060 = vld [vmem:[#allocation4 + $0x210] sm:$0xff]
    %v1061 = vld [vmem:[#allocation4 + $0x218] sm:$0xff]
    %v1062 = vld [vmem:[#allocation4 + $0x220] sm:$0xff]
    %v1063 = vld [vmem:[#allocation4 + $0x228] sm:$0xff]
    %v1064 = vld [vmem:[#allocation4 + $0x230] sm:$0xff]
    %v1065 = vld [vmem:[#allocation4 + $0x238] sm:$0xff]
    %v1066 = vld [vmem:[#allocation4 + $0x240] sm:$0xff]
    %v1067 = vld [vmem:[#allocation4 + $0x248] sm:$0xff]
    %v1068 = vld [vmem:[#allocation4 + $0x250] sm:$0xff]
    %v1069 = vld [vmem:[#allocation4 + $0x258] sm:$0xff]
    %v1070 = vld [vmem:[#allocation4 + $0x260] sm:$0xff]
    %v1071 = vld [vmem:[#allocation4 + $0x268] sm:$0xff]
    %v1072 = vld [vmem:[#allocation4 + $0x270] sm:$0xff]
    %v1073 = vld [vmem:[#allocation4 + $0x278] sm:$0xff]
    %v1074 = vld [vmem:[#allocation4 + $0x280] sm:$0xff]
    %v1075 = vld [vmem:[#allocation4 + $0x288] sm:$0xff]
    %v1076 = vld [vmem:[#allocation4 + $0x290] sm:$0xff]
    %v1077 = vld [vmem:[#allocation4 + $0x298] sm:$0xff]
    %v1078 = vld [vmem:[#allocation4 + $0x2a0] sm:$0xff]
    %v1079 = vld [vmem:[#allocation4 + $0x2a8] sm:$0xff]
    %v1080 = vld [vmem:[#allocation4 + $0x2b0] sm:$0xff]
    %v1081 = vld [vmem:[#allocation4 + $0x2b8] sm:$0xff]
    %v1082 = vld [vmem:[#allocation4 + $0x2c0] sm:$0xff]
    %v1083 = vld [vmem:[#allocation4 + $0x2c8] sm:$0xff]
    %v1084 = vld [vmem:[#allocation4 + $0x2d0] sm:$0xff]
    %v1085 = vld [vmem:[#allocation4 + $0x2d8] sm:$0xff]
    %v1086 = vld [vmem:[#allocation4 + $0x2e0] sm:$0xff]
    %v1087 = vld [vmem:[#allocation4 + $0x2e8] sm:$0xff]
    %v1088 = vld [vmem:[#allocation4 + $0x2f0] sm:$0xff]
    %v1089 = vld [vmem:[#allocation4 + $0x2f8] sm:$0xff]
    %v1090 = vld [vmem:[#allocation4 + $0x300] sm:$0xff]
    %v1091 = vld [vmem:[#allocation4 + $0x308] sm:$0xff]
    %v1092 = vld [vmem:[#allocation4 + $0x310] sm:$0xff]
    %v1093 = vld [vmem:[#allocation4 + $0x318] sm:$0xff]
    %v1094 = vld [vmem:[#allocation4 + $0x320] sm:$0xff]
    %v1095 = vld [vmem:[#allocation4 + $0x328] sm:$0xff]
    %v1096 = vld [vmem:[#allocation4 + $0x330] sm:$0xff]
    %v1097 = vld [vmem:[#allocation4 + $0x338] sm:$0xff]
    %v1098 = vld [vmem:[#allocation4 + $0x340] sm:$0xff]
    %v1099 = vld [vmem:[#allocation4 + $0x348] sm:$0xff]
    %v1100 = vld [vmem:[#allocation4 + $0x350] sm:$0xff]
    %v1101 = vld [vmem:[#allocation4 + $0x358] sm:$0xff]
    %v1102 = vld [vmem:[#allocation4 + $0x360] sm:$0xff]
    %v1103 = vld [vmem:[#allocation4 + $0x368] sm:$0xff]
    %v1104 = vld [vmem:[#allocation4 + $0x370] sm:$0xff]
    %v1105 = vld [vmem:[#allocation4 + $0x378] sm:$0xff]
    %v1106 = vld [vmem:[#allocation4 + $0x380] sm:$0xff]
    %v1107 = vld [vmem:[#allocation4 + $0x388] sm:$0xff]
    %v1108 = vld [vmem:[#allocation4 + $0x390] sm:$0xff]
    %v1109 = vld [vmem:[#allocation4 + $0x398] sm:$0xff]
    %v1110 = vld [vmem:[#allocation4 + $0x3a0] sm:$0xff]
    %v1111 = vld [vmem:[#allocation4 + $0x3a8] sm:$0xff]
    %v1112 = vld [vmem:[#allocation4 + $0x3b0] sm:$0xff]
    %v1113 = vld [vmem:[#allocation4 + $0x3b8] sm:$0xff]
    %v1114 = vld [vmem:[#allocation4 + $0x3c0] sm:$0xff]
    %v1115 = vld [vmem:[#allocation4 + $0x3c8] sm:$0xff]
    %v1116 = vld [vmem:[#allocation4 + $0x3d0] sm:$0xff]
    %v1117 = vld [vmem:[#allocation4 + $0x3d8] sm:$0xff]
    %v1118 = vld [vmem:[#allocation4 + $0x3e0] sm:$0xff]
    %v1119 = vld [vmem:[#allocation4 + $0x3e8] sm:$0xff]
    %v1120 = vld [vmem:[#allocation4 + $0x3f0] sm:$0xff]
    %v1121 = vld [vmem:[#allocation4 + $0x3f8] sm:$0xff]
    %v1122 = vld [vmem:[%s2 + $0xc] sm:$0xff]
    %v1123 = vld [vmem:[#allocation5] sm:$0xff]
    %v1124 = vld [vmem:[#allocation5 + $0x8] sm:$0xff]
    %v1125 = vld [vmem:[#allocation5 + $0x10] sm:$0xff]
    %v1126 = vld [vmem:[#allocation5 + $0x18] sm:$0xff]
    %v1127 = vld [vmem:[#allocation5 + $0x20] sm:$0xff]
    %v1128 = vld [vmem:[#allocation5 + $0x28] sm:$0xff]
    %v1129 = vld [vmem:[#allocation5 + $0x30] sm:$0xff]
    %v1130 = vld [vmem:[#allocation5 + $0x38] sm:$0xff]
    %v1131 = vld [vmem:[#allocation5 + $0x40] sm:$0xff]
    %v1132 = vld [vmem:[#allocation5 + $0x48] sm:$0xff]
    %v1133 = vld [vmem:[#allocation5 + $0x50] sm:$0xff]
    %v1134 = vld [vmem:[#allocation5 + $0x58] sm:$0xff]
    %v1135 = vld [vmem:[#allocation5 + $0x60] sm:$0xff]
    %v1136 = vld [vmem:[#allocation5 + $0x68] sm:$0xff]
    %v1137 = vld [vmem:[#allocation5 + $0x70] sm:$0xff]
    %v1138 = vld [vmem:[#allocation5 + $0x78] sm:$0xff]
    %v1139 = vld [vmem:[#allocation5 + $0x80] sm:$0xff]
    %v1140 = vld [vmem:[#allocation5 + $0x88] sm:$0xff]
    %v1141 = vld [vmem:[#allocation5 + $0x90] sm:$0xff]
    %v1142 = vld [vmem:[#allocation5 + $0x98] sm:$0xff]
    %v1143 = vld [vmem:[#allocation5 + $0xa0] sm:$0xff]
    %v1144 = vld [vmem:[#allocation5 + $0xa8] sm:$0xff]
    %v1145 = vld [vmem:[#allocation5 + $0xb0] sm:$0xff]
    %v1146 = vld [vmem:[#allocation5 + $0xb8] sm:$0xff]
    %v1147 = vld [vmem:[#allocation5 + $0xc0] sm:$0xff]
    %v1148 = vld [vmem:[#allocation5 + $0xc8] sm:$0xff]
    %v1149 = vld [vmem:[#allocation5 + $0xd0] sm:$0xff]
    %v1150 = vld [vmem:[#allocation5 + $0xd8] sm:$0xff]
    %v1151 = vld [vmem:[#allocation5 + $0xe0] sm:$0xff]
    %v1152 = vld [vmem:[#allocation5 + $0xe8] sm:$0xff]
    %v1153 = vld [vmem:[#allocation5 + $0xf0] sm:$0xff]
    %v1154 = vld [vmem:[#allocation5 + $0xf8] sm:$0xff]
    %v1155 = vld [vmem:[#allocation5 + $0x100] sm:$0xff]
    %v1156 = vld [vmem:[#allocation5 + $0x108] sm:$0xff]
    %v1157 = vld [vmem:[#allocation5 + $0x110] sm:$0xff]
    %v1158 = vld [vmem:[#allocation5 + $0x118] sm:$0xff]
    %v1159 = vld [vmem:[#allocation5 + $0x120] sm:$0xff]
    %v1160 = vld [vmem:[#allocation5 + $0x128] sm:$0xff]
    %v1161 = vld [vmem:[#allocation5 + $0x130] sm:$0xff]
    %v1162 = vld [vmem:[#allocation5 + $0x138] sm:$0xff]
    %v1163 = vld [vmem:[#allocation5 + $0x140] sm:$0xff]
    %v1164 = vld [vmem:[#allocation5 + $0x148] sm:$0xff]
    %v1165 = vld [vmem:[#allocation5 + $0x150] sm:$0xff]
    %v1166 = vld [vmem:[#allocation5 + $0x158] sm:$0xff]
    %v1167 = vld [vmem:[#allocation5 + $0x160] sm:$0xff]
    %v1168 = vld [vmem:[#allocation5 + $0x168] sm:$0xff]
    %v1169 = vld [vmem:[#allocation5 + $0x170] sm:$0xff]
    %v1170 = vld [vmem:[#allocation5 + $0x178] sm:$0xff]
    %v1171 = vld [vmem:[#allocation5 + $0x180] sm:$0xff]
    %v1172 = vld [vmem:[#allocation5 + $0x188] sm:$0xff]
    %v1173 = vld [vmem:[#allocation5 + $0x190] sm:$0xff]
    %v1174 = vld [vmem:[#allocation5 + $0x198] sm:$0xff]
    %v1175 = vld [vmem:[#allocation5 + $0x1a0] sm:$0xff]
    %v1176 = vld [vmem:[#allocation5 + $0x1a8] sm:$0xff]
    %v1177 = vld [vmem:[#allocation5 + $0x1b0] sm:$0xff]
    %v1178 = vld [vmem:[#allocation5 + $0x1b8] sm:$0xff]
    %v1179 = vld [vmem:[#allocation5 + $0x1c0] sm:$0xff]
    %v1180 = vld [vmem:[#allocation5 + $0x1c8] sm:$0xff]
    %v1181 = vld [vmem:[#allocation5 + $0x1d0] sm:$0xff]
    %v1182 = vld [vmem:[#allocation5 + $0x1d8] sm:$0xff]
    %v1183 = vld [vmem:[#allocation5 + $0x1e0] sm:$0xff]
    %v1184 = vld [vmem:[#allocation5 + $0x1e8] sm:$0xff]
    %v1185 = vld [vmem:[#allocation5 + $0x1f0] sm:$0xff]
    %v1186 = vld [vmem:[#allocation5 + $0x1f8] sm:$0xff]
    %v1187 = vld [vmem:[#allocation5 + $0x200] sm:$0xff]
    %v1188 = vld [vmem:[#allocation5 + $0x208] sm:$0xff]
    %v1189 = vld [vmem:[#allocation5 + $0x210] sm:$0xff]
    %v1190 = vld [vmem:[#allocation5 + $0x218] sm:$0xff]
    %v1191 = vld [vmem:[#allocation5 + $0x220] sm:$0xff]
    %v1192 = vld [vmem:[#allocation5 + $0x228] sm:$0xff]
    %v1193 = vld [vmem:[#allocation5 + $0x230] sm:$0xff]
    %v1194 = vld [vmem:[#allocation5 + $0x238] sm:$0xff]
    %v1195 = vld [vmem:[#allocation5 + $0x240] sm:$0xff]
    %v1196 = vld [vmem:[#allocation5 + $0x248] sm:$0xff]
    %v1197 = vld [vmem:[#allocation5 + $0x250] sm:$0xff]
    %v1198 = vld [vmem:[#allocation5 + $0x258] sm:$0xff]
    %v1199 = vld [vmem:[#allocation5 + $0x260] sm:$0xff]
    %v1200 = vld [vmem:[#allocation5 + $0x268] sm:$0xff]
    %v1201 = vld [vmem:[#allocation5 + $0x270] sm:$0xff]
    %v1202 = vld [vmem:[#allocation5 + $0x278] sm:$0xff]
    %v1203 = vld [vmem:[#allocation5 + $0x280] sm:$0xff]
    %v1204 = vld [vmem:[#allocation5 + $0x288] sm:$0xff]
    %v1205 = vld [vmem:[#allocation5 + $0x290] sm:$0xff]
    %v1206 = vld [vmem:[#allocation5 + $0x298] sm:$0xff]
    %v1207 = vld [vmem:[#allocation5 + $0x2a0] sm:$0xff]
    %v1208 = vld [vmem:[#allocation5 + $0x2a8] sm:$0xff]
    %v1209 = vld [vmem:[#allocation5 + $0x2b0] sm:$0xff]
    %v1210 = vld [vmem:[#allocation5 + $0x2b8] sm:$0xff]
    %v1211 = vld [vmem:[#allocation5 + $0x2c0] sm:$0xff]
    %v1212 = vld [vmem:[#allocation5 + $0x2c8] sm:$0xff]
    %v1213 = vld [vmem:[#allocation5 + $0x2d0] sm:$0xff]
    %v1214 = vld [vmem:[#allocation5 + $0x2d8] sm:$0xff]
    %v1215 = vld [vmem:[#allocation5 + $0x2e0] sm:$0xff]
    %v1216 = vld [vmem:[#allocation5 + $0x2e8] sm:$0xff]
    %v1217 = vld [vmem:[#allocation5 + $0x2f0] sm:$0xff]
    %v1218 = vld [vmem:[#allocation5 + $0x2f8] sm:$0xff]
    %v1219 = vld [vmem:[#allocation5 + $0x300] sm:$0xff]
    %v1220 = vld [vmem:[#allocation5 + $0x308] sm:$0xff]
    %v1221 = vld [vmem:[#allocation5 + $0x310] sm:$0xff]
    %v1222 = vld [vmem:[#allocation5 + $0x318] sm:$0xff]
    %v1223 = vld [vmem:[#allocation5 + $0x320] sm:$0xff]
    %v1224 = vld [vmem:[#allocation5 + $0x328] sm:$0xff]
    %v1225 = vld [vmem:[#allocation5 + $0x330] sm:$0xff]
    %v1226 = vld [vmem:[#allocation5 + $0x338] sm:$0xff]
    %v1227 = vld [vmem:[#allocation5 + $0x340] sm:$0xff]
    %v1228 = vld [vmem:[#allocation5 + $0x348] sm:$0xff]
    %v1229 = vld [vmem:[#allocation5 + $0x350] sm:$0xff]
    %v1230 = vld [vmem:[#allocation5 + $0x358] sm:$0xff]
    %v1231 = vld [vmem:[#allocation5 + $0x360] sm:$0xff]
    %v1232 = vld [vmem:[#allocation5 + $0x368] sm:$0xff]
    %v1233 = vld [vmem:[#allocation5 + $0x370] sm:$0xff]
    %v1234 = vld [vmem:[#allocation5 + $0x378] sm:$0xff]
    %v1235 = vld [vmem:[#allocation5 + $0x380] sm:$0xff]
    %v1236 = vld [vmem:[#allocation5 + $0x388] sm:$0xff]
    %v1237 = vld [vmem:[#allocation5 + $0x390] sm:$0xff]
    %v1238 = vld [vmem:[#allocation5 + $0x398] sm:$0xff]
    %v1239 = vld [vmem:[#allocation5 + $0x3a0] sm:$0xff]
    %v1240 = vld [vmem:[#allocation5 + $0x3a8] sm:$0xff]
    %v1241 = vld [vmem:[#allocation5 + $0x3b0] sm:$0xff]
    %v1242 = vld [vmem:[#allocation5 + $0x3b8] sm:$0xff]
    %v1243 = vld [vmem:[#allocation5 + $0x3c0] sm:$0xff]
    %v1244 = vld [vmem:[#allocation5 + $0x3c8] sm:$0xff]
    %v1245 = vld [vmem:[#allocation5 + $0x3d0] sm:$0xff]
    %v1246 = vld [vmem:[#allocation5 + $0x3d8] sm:$0xff]
    %v1247 = vld [vmem:[#allocation5 + $0x3e0] sm:$0xff]
    %v1248 = vld [vmem:[#allocation5 + $0x3e8] sm:$0xff]
    %v1249 = vld [vmem:[#allocation5 + $0x3f0] sm:$0xff]
    %v1250 = vld [vmem:[#allocation5 + $0x3f8] sm:$0xff]
    %v1251 = vld [vmem:[%s2 + $0x14] sm:$0xf]
    %v1253 = vlaneseq
    %v1254 = vshrl.u32 %v1253, 7
    %v1255 = vsub.s32 0, %v1254
    %v1256 = vrot.slane %v1122, %v1255
    %v1257 = vlaneseq
    %v1258 = vshrl.u32 %v1257, 7
    %v1259 = vsub.s32 1, %v1258
    %v1260 = vrot.slane %v1122, %v1259
    %v1261 = vlaneseq
    %v1262 = vshrl.u32 %v1261, 7
    %v1263 = vsub.s32 2, %v1262
    %v1264 = vrot.slane %v1122, %v1263
    %v1265 = vlaneseq
    %v1266 = vshrl.u32 %v1265, 7
    %v1267 = vsub.s32 3, %v1266
    %v1268 = vrot.slane %v1122, %v1267
    %v1269 = vlaneseq
    %v1270 = vshrl.u32 %v1269, 7
    %v1271 = vsub.s32 4, %v1270
    %v1272 = vrot.slane %v1122, %v1271
    %v1273 = vlaneseq
    %v1274 = vshrl.u32 %v1273, 7
    %v1275 = vsub.s32 5, %v1274
    %v1276 = vrot.slane %v1122, %v1275
    %v1277 = vlaneseq
    %v1278 = vshrl.u32 %v1277, 7
    %v1279 = vsub.s32 6, %v1278
    %v1280 = vrot.slane %v1122, %v1279
    %v1281 = vlaneseq
    %v1282 = vshrl.u32 %v1281, 7
    %v1283 = vsub.s32 7, %v1282
    %v1284 = vrot.slane %v1122, %v1283
    %1293 = vmatprep.subr.bf16.mxu0 %v995
    %1294 = vmatpush1.bf16.msra.mxu0 %v994
    %1295 = vmatprep.subr.bf16.mxu0 %v1003
    %1296 = vmatpush1.bf16.msra.mxu0 %v1002
    %1297 = vmatprep.subr.bf16.mxu0 %v1011
    %1298 = vmatpush1.bf16.msra.mxu0 %v1010
    %1299 = vmatprep.subr.bf16.mxu0 %v1019
    %1300 = vmatpush1.bf16.msra.mxu0 %v1018
    %1301 = vmatprep.subr.bf16.mxu0 %v1027
    %1302 = vmatpush1.bf16.msra.mxu0 %v1026
    %1303 = vmatprep.subr.bf16.mxu0 %v1035
    %1304 = vmatpush1.bf16.msra.mxu0 %v1034
    %1305 = vmatprep.subr.bf16.mxu0 %v1043
    %1306 = vmatpush1.bf16.msra.mxu0 %v1042
    %1307 = vmatprep.subr.bf16.mxu0 %v1051
    %1308 = vmatpush1.bf16.msra.mxu0 %v1050
    %1309 = vmatprep.subr.bf16.mxu0 %v1059
    %1310 = vmatpush1.bf16.msra.mxu0 %v1058
    %1311 = vmatprep.subr.bf16.mxu0 %v1067
    %1312 = vmatpush1.bf16.msra.mxu0 %v1066
    %1313 = vmatprep.subr.bf16.mxu0 %v1075
    %1314 = vmatpush1.bf16.msra.mxu0 %v1074
    %1315 = vmatprep.subr.bf16.mxu0 %v1083
    %1316 = vmatpush1.bf16.msra.mxu0 %v1082
    %1317 = vmatprep.subr.bf16.mxu0 %v1091
    %1318 = vmatpush1.bf16.msra.mxu0 %v1090
    %1319 = vmatprep.subr.bf16.mxu0 %v1099
    %1320 = vmatpush1.bf16.msra.mxu0 %v1098
    %1321 = vmatprep.subr.bf16.mxu0 %v1107
    %1322 = vmatpush1.bf16.msra.mxu0 %v1106
    %1323 = vmatprep.subr.bf16.mxu0 %v1115
    %1324 = vmatpush1.bf16.msra.mxu0 %v1114
    %1325 = vmatprep.mubr.bf16.mxu0 %v986
    %1326 = vmatmul.mubr.bf16.gmra.mrb[0].mxu0 %v985
    %v1327 = vpop.f32.mrb[0].mxu0
    %v1328 = vadd.f32 %v1256, %v1327
    %v1329 = vpop.f32.mrb[0].mxu0
    %v1330 = vadd.f32 %v1260, %v1329
    %v1331 = vpop.f32.mrb[0].mxu0
    %v1332 = vadd.f32 %v1256, %v1331
    %v1333 = vpop.f32.mrb[0].mxu0
    %v1334 = vadd.f32 %v1260, %v1333
    %1335 = vdwg.mxu0
    %1336 = vmatprep.subr.bf16.mxu0 %v997
    %1337 = vmatpush1.bf16.msra.mxu0 %v996
    %1338 = vmatprep.subr.bf16.mxu0 %v1005
    %1339 = vmatpush1.bf16.msra.mxu0 %v1004
    %1340 = vmatprep.subr.bf16.mxu0 %v1013
    %1341 = vmatpush1.bf16.msra.mxu0 %v1012
    %1342 = vmatprep.subr.bf16.mxu0 %v1021
    %1343 = vmatpush1.bf16.msra.mxu0 %v1020
    %1344 = vmatprep.subr.bf16.mxu0 %v1029
    %1345 = vmatpush1.bf16.msra.mxu0 %v1028
    %1346 = vmatprep.subr.bf16.mxu0 %v1037
    %1347 = vmatpush1.bf16.msra.mxu0 %v1036
    %1348 = vmatprep.subr.bf16.mxu0 %v1045
    %1349 = vmatpush1.bf16.msra.mxu0 %v1044
    %1350 = vmatprep.subr.bf16.mxu0 %v1053
    %1351 = vmatpush1.bf16.msra.mxu0 %v1052
    %1352 = vmatprep.subr.bf16.mxu0 %v1061
    %1353 = vmatpush1.bf16.msra.mxu0 %v1060
    %1354 = vmatprep.subr.bf16.mxu0 %v1069
    %1355 = vmatpush1.bf16.msra.mxu0 %v1068
    %1356 = vmatprep.subr.bf16.mxu0 %v1077
    %1357 = vmatpush1.bf16.msra.mxu0 %v1076
    %1358 = vmatprep.subr.bf16.mxu0 %v1085
    %1359 = vmatpush1.bf16.msra.mxu0 %v1084
    %1360 = vmatprep.subr.bf16.mxu0 %v1093
    %1361 = vmatpush1.bf16.msra.mxu0 %v1092
    %1362 = vmatprep.subr.bf16.mxu0 %v1101
    %1363 = vmatpush1.bf16.msra.mxu0 %v1100
    %1364 = vmatprep.subr.bf16.mxu0 %v1109
    %1365 = vmatpush1.bf16.msra.mxu0 %v1108
    %1366 = vmatprep.subr.bf16.mxu0 %v1117
    %1367 = vmatpush1.bf16.msra.mxu0 %v1116
    %1368 = vmatprep.mubr.bf16.mxu0 %v986
    %1369 = vmatmul.mubr.bf16.gmra.mrb[0].mxu0 %v985
    %v1370 = vpop.f32.mrb[0].mxu0
    %v1371 = vadd.f32 %v1264, %v1370
    %v1372 = vpop.f32.mrb[0].mxu0
    %v1373 = vadd.f32 %v1268, %v1372
    %v1374 = vpop.f32.mrb[0].mxu0
    %v1375 = vadd.f32 %v1264, %v1374
    %v1376 = vpop.f32.mrb[0].mxu0
    %v1377 = vadd.f32 %v1268, %v1376
    %1378 = vdwg.mxu0
    %1379 = vmatprep.subr.bf16.mxu0 %v999
    %1380 = vmatpush1.bf16.msra.mxu0 %v998
    %1381 = vmatprep.subr.bf16.mxu0 %v1007
    %1382 = vmatpush1.bf16.msra.mxu0 %v1006
    %1383 = vmatprep.subr.bf16.mxu0 %v1015
    %1384 = vmatpush1.bf16.msra.mxu0 %v1014
    %1385 = vmatprep.subr.bf16.mxu0 %v1023
    %1386 = vmatpush1.bf16.msra.mxu0 %v1022
    %1387 = vmatprep.subr.bf16.mxu0 %v1031
    %1388 = vmatpush1.bf16.msra.mxu0 %v1030
    %1389 = vmatprep.subr.bf16.mxu0 %v1039
    %1390 = vmatpush1.bf16.msra.mxu0 %v1038
    %1391 = vmatprep.subr.bf16.mxu0 %v1047
    %1392 = vmatpush1.bf16.msra.mxu0 %v1046
    %1393 = vmatprep.subr.bf16.mxu0 %v1055
    %1394 = vmatpush1.bf16.msra.mxu0 %v1054
    %1395 = vmatprep.subr.bf16.mxu0 %v1063
    %1396 = vmatpush1.bf16.msra.mxu0 %v1062
    %1397 = vmatprep.subr.bf16.mxu0 %v1071
    %1398 = vmatpush1.bf16.msra.mxu0 %v1070
    %1399 = vmatprep.subr.bf16.mxu0 %v1079
    %1400 = vmatpush1.bf16.msra.mxu0 %v1078
    %1401 = vmatprep.subr.bf16.mxu0 %v1087
    %1402 = vmatpush1.bf16.msra.mxu0 %v1086
    %1403 = vmatprep.subr.bf16.mxu0 %v1095
    %1404 = vmatpush1.bf16.msra.mxu0 %v1094
    %1405 = vmatprep.subr.bf16.mxu0 %v1103
    %1406 = vmatpush1.bf16.msra.mxu0 %v1102
    %1407 = vmatprep.subr.bf16.mxu0 %v1111
    %1408 = vmatpush1.bf16.msra.mxu0 %v1110
    %1409 = vmatprep.subr.bf16.mxu0 %v1119
    %1410 = vmatpush1.bf16.msra.mxu0 %v1118
    %1411 = vmatprep.mubr.bf16.mxu0 %v986
    %1412 = vmatmul.mubr.bf16.gmra.mrb[0].mxu0 %v985
    %v1413 = vpop.f32.mrb[0].mxu0
    %v1414 = vadd.f32 %v1272, %v1413
    %v1415 = vpop.f32.mrb[0].mxu0
    %v1416 = vadd.f32 %v1276, %v1415
    %v1417 = vpop.f32.mrb[0].mxu0
    %v1418 = vadd.f32 %v1272, %v1417
    %v1419 = vpop.f32.mrb[0].mxu0
    %v1420 = vadd.f32 %v1276, %v1419
    %1421 = vdwg.mxu0
    %1422 = vmatprep.subr.bf16.mxu0 %v1001
    %1423 = vmatpush1.bf16.msra.mxu0 %v1000
    %1424 = vmatprep.subr.bf16.mxu0 %v1009
    %1425 = vmatpush1.bf16.msra.mxu0 %v1008
    %1426 = vmatprep.subr.bf16.mxu0 %v1017
    %1427 = vmatpush1.bf16.msra.mxu0 %v1016
    %1428 = vmatprep.subr.bf16.mxu0 %v1025
    %1429 = vmatpush1.bf16.msra.mxu0 %v1024
    %1430 = vmatprep.subr.bf16.mxu0 %v1033
    %1431 = vmatpush1.bf16.msra.mxu0 %v1032
    %1432 = vmatprep.subr.bf16.mxu0 %v1041
    %1433 = vmatpush1.bf16.msra.mxu0 %v1040
    %1434 = vmatprep.subr.bf16.mxu0 %v1049
    %1435 = vmatpush1.bf16.msra.mxu0 %v1048
    %1436 = vmatprep.subr.bf16.mxu0 %v1057
    %1437 = vmatpush1.bf16.msra.mxu0 %v1056
    %1438 = vmatprep.subr.bf16.mxu0 %v1065
    %1439 = vmatpush1.bf16.msra.mxu0 %v1064
    %1440 = vmatprep.subr.bf16.mxu0 %v1073
    %1441 = vmatpush1.bf16.msra.mxu0 %v1072
    %1442 = vmatprep.subr.bf16.mxu0 %v1081
    %1443 = vmatpush1.bf16.msra.mxu0 %v1080
    %1444 = vmatprep.subr.bf16.mxu0 %v1089
    %1445 = vmatpush1.bf16.msra.mxu0 %v1088
    %1446 = vmatprep.subr.bf16.mxu0 %v1097
    %1447 = vmatpush1.bf16.msra.mxu0 %v1096
    %1448 = vmatprep.subr.bf16.mxu0 %v1105
    %1449 = vmatpush1.bf16.msra.mxu0 %v1104
    %1450 = vmatprep.subr.bf16.mxu0 %v1113
    %1451 = vmatpush1.bf16.msra.mxu0 %v1112
    %1452 = vmatprep.subr.bf16.mxu0 %v1121
    %1453 = vmatpush1.bf16.msra.mxu0 %v1120
    %1454 = vmatprep.mubr.bf16.mxu0 %v986
    %1455 = vmatmul.mubr.bf16.gmra.mrb[0].mxu0 %v985
    %v1456 = vpop.f32.mrb[0].mxu0
    %v1457 = vadd.f32 %v1280, %v1456
    %v1458 = vpop.f32.mrb[0].mxu0
    %v1459 = vadd.f32 %v1284, %v1458
    %v1460 = vpop.f32.mrb[0].mxu0
    %v1461 = vadd.f32 %v1280, %v1460
    %v1462 = vpop.f32.mrb[0].mxu0
    %v1463 = vadd.f32 %v1284, %v1462
    %1464 = vdwg.mxu0
    %v1465 = vmax.f32 %v1328, 0.0
    %v1466 = vmax.f32 %v1330, 0.0
    %v1467 = vmax.f32 %v1371, 0.0
    %v1468 = vmax.f32 %v1373, 0.0
    %v1469 = vmax.f32 %v1332, 0.0
    %v1470 = vmax.f32 %v1334, 0.0
    %v1471 = vmax.f32 %v1375, 0.0
    %v1472 = vmax.f32 %v1377, 0.0
    %v1473 = vpack.c.bf16 %v1469, %v1465
    %v1474 = vpack.c.bf16 %v1470, %v1466
    %v1475 = vpack.c.bf16 %v1471, %v1467
    %v1476 = vpack.c.bf16 %v1472, %v1468
    %v1478 = vlaneseq
    %v1479 = vshrl.u32 %v1478, 7
    %v1480 = vsub.s32 0, %v1479
    %v1481 = vrot.slane %v1251, %v1480
    %v1482 = vlaneseq
    %v1483 = vshrl.u32 %v1482, 7
    %v1484 = vsub.s32 1, %v1483
    %v1485 = vrot.slane %v1251, %v1484
    %v1486 = vlaneseq
    %v1487 = vshrl.u32 %v1486, 7
    %v1488 = vsub.s32 2, %v1487
    %v1489 = vrot.slane %v1251, %v1488
    %v1490 = vlaneseq
    %v1491 = vshrl.u32 %v1490, 7
    %v1492 = vsub.s32 3, %v1491
    %v1493 = vrot.slane %v1251, %v1492
    %1498 = vmatprep.subr.bf16.mxu0 %v1124
    %1499 = vmatpush1.bf16.msra.mxu0 %v1123
    %1500 = vmatprep.subr.bf16.mxu0 %v1128
    %1501 = vmatpush1.bf16.msra.mxu0 %v1127
    %1502 = vmatprep.subr.bf16.mxu0 %v1132
    %1503 = vmatpush1.bf16.msra.mxu0 %v1131
    %1504 = vmatprep.subr.bf16.mxu0 %v1136
    %1505 = vmatpush1.bf16.msra.mxu0 %v1135
    %1506 = vmatprep.subr.bf16.mxu0 %v1140
    %1507 = vmatpush1.bf16.msra.mxu0 %v1139
    %1508 = vmatprep.subr.bf16.mxu0 %v1144
    %1509 = vmatpush1.bf16.msra.mxu0 %v1143
    %1510 = vmatprep.subr.bf16.mxu0 %v1148
    %1511 = vmatpush1.bf16.msra.mxu0 %v1147
    %1512 = vmatprep.subr.bf16.mxu0 %v1152
    %1513 = vmatpush1.bf16.msra.mxu0 %v1151
    %1514 = vmatprep.subr.bf16.mxu0 %v1156
    %1515 = vmatpush1.bf16.msra.mxu0 %v1155
    %1516 = vmatprep.subr.bf16.mxu0 %v1160
    %1517 = vmatpush1.bf16.msra.mxu0 %v1159
    %1518 = vmatprep.subr.bf16.mxu0 %v1164
    %1519 = vmatpush1.bf16.msra.mxu0 %v1163
    %1520 = vmatprep.subr.bf16.mxu0 %v1168
    %1521 = vmatpush1.bf16.msra.mxu0 %v1167
    %1522 = vmatprep.subr.bf16.mxu0 %v1172
    %1523 = vmatpush1.bf16.msra.mxu0 %v1171
    %1524 = vmatprep.subr.bf16.mxu0 %v1176
    %1525 = vmatpush1.bf16.msra.mxu0 %v1175
    %1526 = vmatprep.subr.bf16.mxu0 %v1180
    %1527 = vmatpush1.bf16.msra.mxu0 %v1179
    %1528 = vmatprep.subr.bf16.mxu0 %v1184
    %1529 = vmatpush1.bf16.msra.mxu0 %v1183
    %1530 = vmatprep.mubr.bf16.mxu0 %v1474
    %1531 = vmatmul.mubr.bf16.gmra.mrb[0].mxu0 %v1473
    %v1532 = vpop.f32.mrb[0].mxu0
    %v1533 = vadd.f32 %v1481, %v1532
    %v1534 = vpop.f32.mrb[0].mxu0
    %v1535 = vadd.f32 %v1485, %v1534
    %v1536 = vpop.f32.mrb[0].mxu0
    %v1537 = vadd.f32 %v1481, %v1536
    %v1538 = vpop.f32.mrb[0].mxu0
    %v1539 = vadd.f32 %v1485, %v1538
    %1540 = vdwg.mxu0
    %1541 = vmatprep.subr.bf16.mxu0 %v1188
    %1542 = vmatpush1.bf16.msra.mxu0 %v1187
    %1543 = vmatprep.subr.bf16.mxu0 %v1192
    %1544 = vmatpush1.bf16.msra.mxu0 %v1191
    %1545 = vmatprep.subr.bf16.mxu0 %v1196
    %1546 = vmatpush1.bf16.msra.mxu0 %v1195
    %1547 = vmatprep.subr.bf16.mxu0 %v1200
    %1548 = vmatpush1.bf16.msra.mxu0 %v1199
    %1549 = vmatprep.subr.bf16.mxu0 %v1204
    %1550 = vmatpush1.bf16.msra.mxu0 %v1203
    %1551 = vmatprep.subr.bf16.mxu0 %v1208
    %1552 = vmatpush1.bf16.msra.mxu0 %v1207
    %1553 = vmatprep.subr.bf16.mxu0 %v1212
    %1554 = vmatpush1.bf16.msra.mxu0 %v1211
    %1555 = vmatprep.subr.bf16.mxu0 %v1216
    %1556 = vmatpush1.bf16.msra.mxu0 %v1215
    %1557 = vmatprep.subr.bf16.mxu0 %v1220
    %1558 = vmatpush1.bf16.msra.mxu0 %v1219
    %1559 = vmatprep.subr.bf16.mxu0 %v1224
    %1560 = vmatpush1.bf16.msra.mxu0 %v1223
    %1561 = vmatprep.subr.bf16.mxu0 %v1228
    %1562 = vmatpush1.bf16.msra.mxu0 %v1227
    %1563 = vmatprep.subr.bf16.mxu0 %v1232
    %1564 = vmatpush1.bf16.msra.mxu0 %v1231
    %1565 = vmatprep.subr.bf16.mxu0 %v1236
    %1566 = vmatpush1.bf16.msra.mxu0 %v1235
    %1567 = vmatprep.subr.bf16.mxu0 %v1240
    %1568 = vmatpush1.bf16.msra.mxu0 %v1239
    %1569 = vmatprep.subr.bf16.mxu0 %v1244
    %1570 = vmatpush1.bf16.msra.mxu0 %v1243
    %1571 = vmatprep.subr.bf16.mxu0 %v1248
    %1572 = vmatpush1.bf16.msra.mxu0 %v1247
    %1573 = vmatprep.mubr.bf16.mxu0 %v1476
    %1574 = vmatmul.mubr.bf16.gmra.mrb[0].mxu0 %v1475
    %v1575 = vpop.f32.mrb[0].mxu0
    %v1576 = vadd.f32 %v1533, %v1575
    %v1577 = vpop.f32.mrb[0].mxu0
    %v1578 = vadd.f32 %v1535, %v1577
    %v1579 = vpop.f32.mrb[0].mxu0
    %v1580 = vadd.f32 %v1537, %v1579
    %v1581 = vpop.f32.mrb[0].mxu0
    %v1582 = vadd.f32 %v1539, %v1581
    %1583 = vdwg.mxu0
    %1584 = vmatprep.subr.bf16.mxu0 %v1126
    %1585 = vmatpush1.bf16.msra.mxu0 %v1125
    %1586 = vmatprep.subr.bf16.mxu0 %v1130
    %1587 = vmatpush1.bf16.msra.mxu0 %v1129
    %1588 = vmatprep.subr.bf16.mxu0 %v1134
    %1589 = vmatpush1.bf16.msra.mxu0 %v1133
    %1590 = vmatprep.subr.bf16.mxu0 %v1138
    %1591 = vmatpush1.bf16.msra.mxu0 %v1137
    %1592 = vmatprep.subr.bf16.mxu0 %v1142
    %1593 = vmatpush1.bf16.msra.mxu0 %v1141
    %1594 = vmatprep.subr.bf16.mxu0 %v1146
    %1595 = vmatpush1.bf16.msra.mxu0 %v1145
    %1596 = vmatprep.subr.bf16.mxu0 %v1150
    %1597 = vmatpush1.bf16.msra.mxu0 %v1149
    %1598 = vmatprep.subr.bf16.mxu0 %v1154
    %1599 = vmatpush1.bf16.msra.mxu0 %v1153
    %1600 = vmatprep.subr.bf16.mxu0 %v1158
    %1601 = vmatpush1.bf16.msra.mxu0 %v1157
    %1602 = vmatprep.subr.bf16.mxu0 %v1162
    %1603 = vmatpush1.bf16.msra.mxu0 %v1161
    %1604 = vmatprep.subr.bf16.mxu0 %v1166
    %1605 = vmatpush1.bf16.msra.mxu0 %v1165
    %1606 = vmatprep.subr.bf16.mxu0 %v1170
    %1607 = vmatpush1.bf16.msra.mxu0 %v1169
    %1608 = vmatprep.subr.bf16.mxu0 %v1174
    %1609 = vmatpush1.bf16.msra.mxu0 %v1173
    %1610 = vmatprep.subr.bf16.mxu0 %v1178
    %1611 = vmatpush1.bf16.msra.mxu0 %v1177
    %1612 = vmatprep.subr.bf16.mxu0 %v1182
    %1613 = vmatpush1.bf16.msra.mxu0 %v1181
    %1614 = vmatprep.subr.bf16.mxu0 %v1186
    %1615 = vmatpush1.bf16.msra.mxu0 %v1185
    %1616 = vmatprep.mubr.bf16.mxu0 %v1474
    %1617 = vmatmul.mubr.bf16.gmra.mrb[0].mxu0 %v1473
    %v1618 = vpop.f32.mrb[0].mxu0
    %v1619 = vadd.f32 %v1489, %v1618
    %v1620 = vpop.f32.mrb[0].mxu0
    %v1621 = vadd.f32 %v1493, %v1620
    %v1622 = vpop.f32.mrb[0].mxu0
    %v1623 = vadd.f32 %v1489, %v1622
    %v1624 = vpop.f32.mrb[0].mxu0
    %v1625 = vadd.f32 %v1493, %v1624
    %1626 = vdwg.mxu0
    %1627 = vmatprep.subr.bf16.mxu0 %v1190
    %1628 = vmatpush1.bf16.msra.mxu0 %v1189
    %1629 = vmatprep.subr.bf16.mxu0 %v1194
    %1630 = vmatpush1.bf16.msra.mxu0 %v1193
    %1631 = vmatprep.subr.bf16.mxu0 %v1198
    %1632 = vmatpush1.bf16.msra.mxu0 %v1197
    %1633 = vmatprep.subr.bf16.mxu0 %v1202
    %1634 = vmatpush1.bf16.msra.mxu0 %v1201
    %1635 = vmatprep.subr.bf16.mxu0 %v1206
    %1636 = vmatpush1.bf16.msra.mxu0 %v1205
    %1637 = vmatprep.subr.bf16.mxu0 %v1210
    %1638 = vmatpush1.bf16.msra.mxu0 %v1209
    %1639 = vmatprep.subr.bf16.mxu0 %v1214
    %1640 = vmatpush1.bf16.msra.mxu0 %v1213
    %1641 = vmatprep.subr.bf16.mxu0 %v1218
    %1642 = vmatpush1.bf16.msra.mxu0 %v1217
    %1643 = vmatprep.subr.bf16.mxu0 %v1222
    %1644 = vmatpush1.bf16.msra.mxu0 %v1221
    %1645 = vmatprep.subr.bf16.mxu0 %v1226
    %1646 = vmatpush1.bf16.msra.mxu0 %v1225
    %1647 = vmatprep.subr.bf16.mxu0 %v1230
    %1648 = vmatpush1.bf16.msra.mxu0 %v1229
    %1649 = vmatprep.subr.bf16.mxu0 %v1234
    %1650 = vmatpush1.bf16.msra.mxu0 %v1233
    %1651 = vmatprep.subr.bf16.mxu0 %v1238
    %1652 = vmatpush1.bf16.msra.mxu0 %v1237
    %1653 = vmatprep.subr.bf16.mxu0 %v1242
    %1654 = vmatpush1.bf16.msra.mxu0 %v1241
    %1655 = vmatprep.subr.bf16.mxu0 %v1246
    %1656 = vmatpush1.bf16.msra.mxu0 %v1245
    %1657 = vmatprep.subr.bf16.mxu0 %v1250
    %1658 = vmatpush1.bf16.msra.mxu0 %v1249
    %1659 = vmatprep.mubr.bf16.mxu0 %v1476
    %1660 = vmatmul.mubr.bf16.gmra.mrb[0].mxu0 %v1475
    %v1661 = vpop.f32.mrb[0].mxu0
    %v1662 = vadd.f32 %v1619, %v1661
    %v1663 = vpop.f32.mrb[0].mxu0
    %v1664 = vadd.f32 %v1621, %v1663
    %v1665 = vpop.f32.mrb[0].mxu0
    %v1666 = vadd.f32 %v1623, %v1665
    %v1667 = vpop.f32.mrb[0].mxu0
    %v1668 = vadd.f32 %v1625, %v1667
    %1669 = vdwg.mxu0
    %v1670 = vadd.f32 %v1576, %v1414
    %v1671 = vadd.f32 %v1578, %v1416
    %v1672 = vadd.f32 %v1662, %v1457
    %v1673 = vadd.f32 %v1664, %v1459
    %v1674 = vadd.f32 %v1580, %v1418
    %v1675 = vadd.f32 %v1582, %v1420
    %v1676 = vadd.f32 %v1666, %v1461
    %v1677 = vadd.f32 %v1668, %v1463
    %v1678 = vmax.f32 %v1670, 0.0
    %v1679 = vmax.f32 %v1671, 0.0
    %v1680 = vmax.f32 %v1672, 0.0
    %v1681 = vmax.f32 %v1673, 0.0
    %v1682 = vmax.f32 %v1674, 0.0
    %v1683 = vmax.f32 %v1675, 0.0
    %v1684 = vmax.f32 %v1676, 0.0
    %v1685 = vmax.f32 %v1677, 0.0
    %v1686 = vpack.c.bf16 %v1682, %v1678
    %v1687 = vpack.c.bf16 %v1683, %v1679
    %v1688 = vpack.c.bf16 %v1684, %v1680
    %v1689 = vpack.c.bf16 %v1685, %v1681
    %s1690 = smul.u32 %s990, 1
    %s1691 = sshll.u32 %s1690, 4
    %1692 = dma.done %s174, %s1691
    %v1693 = vld [vmem:[#allocation6] sm:$0xff]
    %v1694 = vld [vmem:[#allocation6 + $0x8] sm:$0xff]
    %v1695 = vld [vmem:[#allocation6 + $0x10] sm:$0xff]
    %v1696 = vld [vmem:[#allocation6 + $0x18] sm:$0xff]
    %v1697 = vld [vmem:[#allocation6 + $0x20] sm:$0xff]
    %v1698 = vld [vmem:[#allocation6 + $0x28] sm:$0xff]
    %v1699 = vld [vmem:[#allocation6 + $0x30] sm:$0xff]
    %v1700 = vld [vmem:[#allocation6 + $0x38] sm:$0xff]
    %v1701 = vld [vmem:[#allocation6 + $0x40] sm:$0xff]
    %v1702 = vld [vmem:[#allocation6 + $0x48] sm:$0xff]
    %v1703 = vld [vmem:[#allocation6 + $0x50] sm:$0xff]
    %v1704 = vld [vmem:[#allocation6 + $0x58] sm:$0xff]
    %v1705 = vld [vmem:[#allocation6 + $0x60] sm:$0xff]
    %v1706 = vld [vmem:[#allocation6 + $0x68] sm:$0xff]
    %v1707 = vld [vmem:[#allocation6 + $0x70] sm:$0xff]
    %v1708 = vld [vmem:[#allocation6 + $0x78] sm:$0xff]
    %v1709 = vld [vmem:[#allocation6 + $0x80] sm:$0xff]
    %v1710 = vld [vmem:[#allocation6 + $0x88] sm:$0xff]
    %v1711 = vld [vmem:[#allocation6 + $0x90] sm:$0xff]
    %v1712 = vld [vmem:[#allocation6 + $0x98] sm:$0xff]
    %v1713 = vld [vmem:[#allocation6 + $0xa0] sm:$0xff]
    %v1714 = vld [vmem:[#allocation6 + $0xa8] sm:$0xff]
    %v1715 = vld [vmem:[#allocation6 + $0xb0] sm:$0xff]
    %v1716 = vld [vmem:[#allocation6 + $0xb8] sm:$0xff]
    %v1717 = vld [vmem:[#allocation6 + $0xc0] sm:$0xff]
    %v1718 = vld [vmem:[#allocation6 + $0xc8] sm:$0xff]
    %v1719 = vld [vmem:[#allocation6 + $0xd0] sm:$0xff]
    %v1720 = vld [vmem:[#allocation6 + $0xd8] sm:$0xff]
    %v1721 = vld [vmem:[#allocation6 + $0xe0] sm:$0xff]
    %v1722 = vld [vmem:[#allocation6 + $0xe8] sm:$0xff]
    %v1723 = vld [vmem:[#allocation6 + $0xf0] sm:$0xff]
    %v1724 = vld [vmem:[#allocation6 + $0xf8] sm:$0xff]
    %v1725 = vld [vmem:[%s2 + $0x18] sm:$0x1]
    %v1727 = vlaneseq
    %v1728 = vshrl.u32 %v1727, 7
    %v1729 = vsub.s32 0, %v1728
    %v1730 = vrot.slane %v1725, %v1729
    %1732 = vmatprep.subr.bf16.mxu0 0
    %1733 = vmatpush1.bf16.msra.mxu0 %v1693
    %1734 = vmatprep.subr.bf16.mxu0 0
    %1735 = vmatpush1.bf16.msra.mxu0 %v1694
    %1736 = vmatprep.subr.bf16.mxu0 0
    %1737 = vmatpush1.bf16.msra.mxu0 %v1695
    %1738 = vmatprep.subr.bf16.mxu0 0
    %1739 = vmatpush1.bf16.msra.mxu0 %v1696
    %1740 = vmatprep.subr.bf16.mxu0 0
    %1741 = vmatpush1.bf16.msra.mxu0 %v1697
    %1742 = vmatprep.subr.bf16.mxu0 0
    %1743 = vmatpush1.bf16.msra.mxu0 %v1698
    %1744 = vmatprep.subr.bf16.mxu0 0
    %1745 = vmatpush1.bf16.msra.mxu0 %v1699
    %1746 = vmatprep.subr.bf16.mxu0 0
    %1747 = vmatpush1.bf16.msra.mxu0 %v1700
    %1748 = vmatprep.subr.bf16.mxu0 0
    %1749 = vmatpush1.bf16.msra.mxu0 %v1701
    %1750 = vmatprep.subr.bf16.mxu0 0
    %1751 = vmatpush1.bf16.msra.mxu0 %v1702
    %1752 = vmatprep.subr.bf16.mxu0 0
    %1753 = vmatpush1.bf16.msra.mxu0 %v1703
    %1754 = vmatprep.subr.bf16.mxu0 0
    %1755 = vmatpush1.bf16.msra.mxu0 %v1704
    %1756 = vmatprep.subr.bf16.mxu0 0
    %1757 = vmatpush1.bf16.msra.mxu0 %v1705
    %1758 = vmatprep.subr.bf16.mxu0 0
    %1759 = vmatpush1.bf16.msra.mxu0 %v1706
    %1760 = vmatprep.subr.bf16.mxu0 0
    %1761 = vmatpush1.bf16.msra.mxu0 %v1707
    %1762 = vmatprep.subr.bf16.mxu0 0
    %1763 = vmatpush1.bf16.msra.mxu0 %v1708
    %1764 = vmatprep.mubr.bf16.mxu0 %v1687
    %1765 = vmatmul.mubr.bf16.gmra.mrb[0].mxu0 %v1686
    %v1766 = vpop.f32.mrb[0].mxu0
    %v1767 = vadd.f32 %v1730, %v1766
    %v1768 = vpop.f32.mrb[0].mxu0
    %v1769 = vpop.f32.mrb[0].mxu0
    %v1770 = vadd.f32 %v1730, %v1769
    %v1771 = vpop.f32.mrb[0].mxu0
    %1772 = vdwg.mxu0
    %1773 = vmatprep.subr.bf16.mxu0 0
    %1774 = vmatpush1.bf16.msra.mxu0 %v1709
    %1775 = vmatprep.subr.bf16.mxu0 0
    %1776 = vmatpush1.bf16.msra.mxu0 %v1710
    %1777 = vmatprep.subr.bf16.mxu0 0
    %1778 = vmatpush1.bf16.msra.mxu0 %v1711
    %1779 = vmatprep.subr.bf16.mxu0 0
    %1780 = vmatpush1.bf16.msra.mxu0 %v1712
    %1781 = vmatprep.subr.bf16.mxu0 0
    %1782 = vmatpush1.bf16.msra.mxu0 %v1713
    %1783 = vmatprep.subr.bf16.mxu0 0
    %1784 = vmatpush1.bf16.msra.mxu0 %v1714
    %1785 = vmatprep.subr.bf16.mxu0 0
    %1786 = vmatpush1.bf16.msra.mxu0 %v1715
    %1787 = vmatprep.subr.bf16.mxu0 0
    %1788 = vmatpush1.bf16.msra.mxu0 %v1716
    %1789 = vmatprep.subr.bf16.mxu0 0
    %1790 = vmatpush1.bf16.msra.mxu0 %v1717
    %1791 = vmatprep.subr.bf16.mxu0 0
    %1792 = vmatpush1.bf16.msra.mxu0 %v1718
    %1793 = vmatprep.subr.bf16.mxu0 0
    %1794 = vmatpush1.bf16.msra.mxu0 %v1719
    %1795 = vmatprep.subr.bf16.mxu0 0
    %1796 = vmatpush1.bf16.msra.mxu0 %v1720
    %1797 = vmatprep.subr.bf16.mxu0 0
    %1798 = vmatpush1.bf16.msra.mxu0 %v1721
    %1799 = vmatprep.subr.bf16.mxu0 0
    %1800 = vmatpush1.bf16.msra.mxu0 %v1722
    %1801 = vmatprep.subr.bf16.mxu0 0
    %1802 = vmatpush1.bf16.msra.mxu0 %v1723
    %1803 = vmatprep.subr.bf16.mxu0 0
    %1804 = vmatpush1.bf16.msra.mxu0 %v1724
    %1805 = vmatprep.mubr.bf16.mxu0 %v1689
    %1806 = vmatmul.mubr.bf16.gmra.mrb[0].mxu0 %v1688
    %v1807 = vpop.f32.mrb[0].mxu0
    %v1808 = vadd.f32 %v1767, %v1807
    %v1809 = vpop.f32.mrb[0].mxu0
    %v1810 = vpop.f32.mrb[0].mxu0
    %v1811 = vadd.f32 %v1770, %v1810
    %v1812 = vpop.f32.mrb[0].mxu0
    %1813 = vdwg.mxu0
    %1814 = vst [vmem:[%s8] sm:$0xff] %v1808
    %1815 = vst [vmem:[%s8 + $0x8] sm:$0xff] %v1811
    // Predicated region
    $region22: #{mynet_forward.1} parent=1 // pred_check
      _
    $region23: #{mynet_forward.1} parent=1 // pred_check_branch
      %1817 = sbr.rel (0) target = $region25
    $region24: #{mynet_forward.1} parent=1 // pred_region
      _
    $region25: #{mynet_forward.1} parent=1 // pred_fallthru
      _
    // Predicated region
    $region26: #{mynet_forward.1} parent=1 // pred_check
      _
    $region27: #{mynet_forward.1} parent=1 // pred_check_branch
      %1819 = sbr.rel (0) target = $region29
    $region28: #{mynet_forward.1} parent=1 // pred_region
      _
    $region29: #{mynet_forward.1} parent=1 // pred_fallthru
      _
    %1820 = vsyncpa [#allocation9], 1
  %1821 = vsyncmov [#allocation7]
  %s1822 = vpop.sfrf %1821
  %p1823 = scmp.eq.s32.totalorder %s1822, 0
  %p1824 = pneg %p1823
  %1826 = shalt.err (%p1824)
  %s1827 = scalar_lea.sflag [#allocation7], 1
  %1828 = vsyncmov %s1827
  %s1829 = vpop.sfrf %1828
  %p1830 = scmp.eq.s32.totalorder %s1829, 0
  %p1831 = pneg %p1830
  %1833 = shalt.err (%p1831)
  %s1834 = scalar_lea.sflag [#allocation7], 2
  %1835 = vsyncmov %s1834
  %s1836 = vpop.sfrf %1835
  %p1837 = scmp.eq.s32.totalorder %s1836, 0
  %p1838 = pneg %p1837
  %1840 = shalt.err (%p1838)
  %s1841 = scalar_lea.sflag [#allocation7], 3
  %1842 = vsyncmov %s1841
  %s1843 = vpop.sfrf %1842
  %p1844 = scmp.eq.s32.totalorder %s1843, 0
  %p1845 = pneg %p1844
  %1847 = shalt.err (%p1845)
  %s1848 = scalar_lea.sflag [#allocation7], 4
  %1849 = vsyncmov %s1848
  %s1850 = vpop.sfrf %1849
  %p1851 = scmp.eq.s32.totalorder %s1850, 0
  %p1852 = pneg %p1851
  %1854 = shalt.err (%p1852)

</llo_original>
